<compile_context>
chip_gen: v7x
topology: tpu7x:2x2x1
jax: 0.10.0
libtpu: 0.0.40
codegen_flags: <defaults>
</compile_context>

<pallas_src>
import functools
import math

import jax
import jax.numpy as jnp
from jax.experimental import pallas as pl
from jax.experimental.pallas import tpu as pltpu


_INV_SQRT2 = 0.7071067811865476


def _gelu_exact(x):
    # torch.nn.GELU() default = exact (erf-based) GELU; multiply, don't divide.
    return 0.5 * x * (1.0 + jax.lax.erf(x * _INV_SQRT2))


def _block_diag(w):
    """(M, R, C) per-group weights -> (M*R, M*C) block-diagonal matrix."""
    M, R, C = w.shape
    eye = jnp.eye(M, dtype=w.dtype)
    return (eye[:, None, :, None] * w[:, :, None, :]).reshape(M * R, M * C)


def _rechunk_operators(n_in, d_in, mlps, dtype=jnp.float32):
    """Constant 0/1 operators realizing torch's flat W1.reshape(B*M, n_in, d_in//M).

    With Y1 (d_in, n_in) the full W1-generator output (column block m = group m)
    and W1r (n_in, d_in) the re-chunked tensor (column block m = W1r_m):
        W1r = sum_a sel[a] @ Y1 @ place[a]
    We return the TRANSPOSED operators so the kernel (which holds Y1^T) computes
        W1r^T = sum_a placeT[a] @ Y1^T @ selT[a]
    with plain matmuls and no in-kernel reshape.
    """
    F = n_in // mlps          # generator per-group feature width
    dg = d_in // mlps         # mixer per-head width
    if d_in % n_in == 0:
        k = d_in // n_in
        p = jnp.arange(n_in)
        r = jnp.arange(d_in)
        a = jnp.arange(k)
        sel = (r[None, None, :] == p[None, :, None] * k + a[:, None, None])
        j = jnp.arange(n_in)
        o = jnp.arange(d_in)
        place = (o[None, None, :] ==
                 (j // F)[None, :, None] * dg + a[:, None, None] * F
                 + (j % F)[None, :, None])
    elif n_in % d_in == 0:
        k = n_in // d_in
        p = jnp.arange(n_in)
        r = jnp.arange(d_in)
        a = jnp.arange(k)
        sel = (((p % k)[None, :, None] == a[:, None, None])
               & (r[None, None, :] == (p // k)[None, :, None]))
        j = jnp.arange(n_in)
        o = jnp.arange(d_in)
        jj = j % F
        place = (((jj // dg)[None, :, None] == a[:, None, None])
                 & (o[None, None, :] ==
                    (j // F)[None, :, None] * dg + (jj % dg)[None, :, None]))
    else:
        # TODO(synk): fully general rechunk (neither d_in | n_in nor n_in | d_in)
        # needs a per-element gather; not implemented.
        raise NotImplementedError("require d_in % n_in == 0 or n_in % d_in == 0")
    selT = jnp.swapaxes(sel.astype(dtype), 1, 2)      # (k, d_in, n_in)
    placeT = jnp.swapaxes(place.astype(dtype), 1, 2)  # (k, d_in, n_in)
    return selT, placeT, k


# ------------------------------ fused kernel ---------------------------------

def _hyper_mixer_fused_kernel(
        x_ref,                                  # (n_in, d_in)
        w1a_ref, w1b1_ref, w1c_ref, w1b2_ref,   # W1-gen, block-diag (cols) / col-bias
        w2a_ref, w2b1_ref, w2c_ref, w2b2_ref,   # W2-gen, block-diag / row-bias
        selT_ref, placeT_ref,                   # (k, d_in, n_in) rechunk operators
        gamma_ref, beta_ref,                    # (1, d_in)
        o_ref,                                  # (n_in, d_in)
        *, mlps, d_group, k, eps, tied):
    f32 = jnp.float32
    x = x_ref[...]                              # (n_in, d_in)
    n_in, d_in = x.shape

    # ---- W1 generator (HyperMixerMLP applied to x^T), evaluated in transposed
    #      space (weights on the left) so x never needs transposing:
    #      y1t[:, l] == w1_gen(x^T)[l, :]                         (n_in, d_in)
    h1t = jnp.dot(w1a_ref[...], x, preferred_element_type=f32)        # (M*H1, d_in)
    h1t = _gelu_exact(h1t + w1b1_ref[...])
    y1t = jnp.dot(w1c_ref[...], h1t, preferred_element_type=f32) + w1b2_ref[...]

    # ---- torch's flat W1.reshape(B*M, n_in, d_in//M), as matmuls against the
    #      constant 0/1 operators:   w1rt == W1r^T  (d_in, n_in)
    def rechunk_term(a):
        tmp = jnp.dot(y1t, selT_ref[a], preferred_element_type=f32)   # (n_in, n_in)
        return jnp.dot(placeT_ref[a], tmp, preferred_element_type=f32)  # (d_in, n_in)

    w1rt = rechunk_term(0)
    for a in range(1, k):                       # static unroll, k tiny
        w1rt = w1rt + rechunk_term(a)

    # ---- W2 generator (HyperMixerMLP applied to x); its output IS already the
    #      re-chunked W2r (n_in, d_in).  tied=True reuses W1 instead.
    if not tied:
        h2 = jax.lax.dot_general(x, w2a_ref[...], (((1,), (1,)), ((), ())),
                                 preferred_element_type=f32)          # (n_in, M*H2)
        h2 = _gelu_exact(h2 + w2b1_ref[...])
        w2r = jax.lax.dot_general(h2, w2c_ref[...], (((1,), (1,)), ((), ())),
                                  preferred_element_type=f32) + w2b2_ref[...]

    # ---- token mixing: column block m of the pre-LayerNorm output T (n_in, d_in)
    #      is  W2r_m @ GELU(out_m @ W1r_m)^T  with out_m = rows m of x^T.
    blocks = []
    for m in range(mlps):                       # static unroll
        lo = m * d_group
        hi = lo + d_group
        # t1^T = W1r_m^T @ out_m^T = w1rt[lo:hi, :] @ x[:, lo:hi]     (dg, dg)
        g = _gelu_exact(jnp.dot(w1rt[lo:hi, :], x[:, lo:hi],
                                preferred_element_type=f32))
        if tied:
            # tied: W2r_m[r, q] == W1r[r, m*dg+q] == w1rt[lo+q, r]
            z = jax.lax.dot_general(w1rt[lo:hi, :], g, (((0,), (0,)), ((), ())),
                                    preferred_element_type=f32)       # (n_in, dg)
        else:
            z = jnp.dot(w2r[:, lo:hi], g, preferred_element_type=f32)  # (n_in, dg)
        blocks.append(z)
    t = blocks[0] if mlps == 1 else jnp.concatenate(blocks, axis=-1)  # (n_in, d_in)

    # ---- single-pass LayerNorm over d_in + affine, one lane-dense store.
    inv_d = 1.0 / d_in
    mean = jnp.sum(t, axis=-1, keepdims=True) * inv_d
    var = jnp.sum(t * t, axis=-1, keepdims=True) * inv_d - mean * mean
    inv = jax.lax.rsqrt(var + eps)
    o_ref[...] = ((t - mean) * inv * gamma_ref[...]
                  + beta_ref[...]).astype(o_ref.dtype)


# ------------------------------- wrapper --------------------------------------

@functools.partial(jax.jit, static_argnames=("mlps", "tied", "eps"))
def hyper_mixer_forward(x, params, *, mlps, tied=False, eps=1e-5):
    """HyperMixer.forward.  x: (B, n_in, d_in) float32 -> (B, n_in, d_in)."""
    w1_gen_params, w2_gen_params, ln_gamma, ln_beta = params
    B, n_in, d_in = x.shape
    M = mlps
    dg = d_in // M

    # Pack per-group generator weights block-diagonally (one-off; would be cached
    # with the params in a real model).
    # TODO(synk): at production sizes where M*F exceeds one MXU tile, switch to
    # per-group matmuls to avoid the M^2 FLOP / VMEM blow-up of the block-diag form.
    w1a, w1b1, w1c, w1b2 = w1_gen_params        # (M,H1,F1),(M,H1),(M,F1,H1),(M,F1)
    H1 = w1a.shape[1]
    a1 = _block_diag(w1a)                       # (M*H1, n_in)
    c1 = _block_diag(w1c)                       # (n_in,  M*H1)
    b1_col = w1b1.reshape(M * H1, 1)
    b2_col = w1b2.reshape(n_in, 1)

    if tied:
        # W2 := W1 in the module; the w2-generator slots are never read.
        a2, c2 = a1, c1
        b1_row = w1b1.reshape(1, M * H1)
        b2_row = w1b2.reshape(1, n_in)
    else:
        w2a, w2b1, w2c, w2b2 = w2_gen_params    # (M,H2,F2),(M,H2),(M,F2,H2),(M,F2)
        H2 = w2a.shape[1]
        a2 = _block_diag(w2a)                   # (M*H2, d_in)
        c2 = _block_diag(w2c)                   # (d_in,  M*H2)
        b1_row = w2b1.reshape(1, M * H2)
        b2_row = w2b2.reshape(1, d_in)

    selT, placeT, k = _rechunk_operators(n_in, d_in, M, x.dtype)
    gamma = ln_gamma.reshape(1, d_in)
    beta = ln_beta.reshape(1, d_in)

    kernel = functools.partial(_hyper_mixer_fused_kernel, mlps=M, d_group=dg,
                               k=k, eps=eps, tied=tied)
    const2 = lambda b: (0, 0)
    const3 = lambda b: (0, 0, 0)

    return pl.pallas_call(
        kernel,
        out_shape=jax.ShapeDtypeStruct((B, n_in, d_in), x.dtype),
        grid_spec=pltpu.PrefetchScalarGridSpec(
            num_scalar_prefetch=0,
            grid=(B,),
            in_specs=[
                pl.BlockSpec((None, n_in, d_in), lambda b: (b, 0, 0)),
                pl.BlockSpec(a1.shape, const2),
                pl.BlockSpec(b1_col.shape, const2),
                pl.BlockSpec(c1.shape, const2),
                pl.BlockSpec(b2_col.shape, const2),
                pl.BlockSpec(a2.shape, const2),
                pl.BlockSpec(b1_row.shape, const2),
                pl.BlockSpec(c2.shape, const2),
                pl.BlockSpec(b2_row.shape, const2),
                pl.BlockSpec(selT.shape, const3),
                pl.BlockSpec(placeT.shape, const3),
                pl.BlockSpec(gamma.shape, const2),
                pl.BlockSpec(beta.shape, const2),
            ],
            out_specs=pl.BlockSpec((None, n_in, d_in), lambda b: (b, 0, 0)),
        ),
        compiler_params=pltpu.CompilerParams(
            dimension_semantics=("parallel",)),
    )(x, a1, b1_col, c1, b2_col, a2, b1_row, c2, b2_row,
      selT, placeT, gamma, beta)


# ------------------------- parameter initialization ---------------------------

def _xavier_uniform(key, shape, gain):
    # Mirrors torch.nn.init.xavier_uniform_ fan computation.
    receptive = 1
    for s in shape[2:]:
        receptive *= s
    fan_in = shape[1] * receptive
    fan_out = shape[0] * receptive
    bound = gain * math.sqrt(6.0 / (fan_in + fan_out))
    return jax.random.uniform(key, shape, jnp.float32, -bound, bound)


def init_hyper_mixer_params(key, n_in, n_hidden, n_out, mlps):
    assert n_in % mlps == 0 and n_out % mlps == 0 and n_hidden % mlps == 0
    n_in_g, n_hid_g, n_out_g = n_in // mlps, n_hidden // mlps, n_out // mlps
    k1, k2, k3, k4 = jax.random.split(key, 4)
    gain = math.sqrt(2.0)
    w1 = _xavier_uniform(k1, (mlps, n_hid_g, n_in_g), gain)
    b1 = _xavier_uniform(k2, (mlps, n_hid_g), gain)
    w2 = _xavier_uniform(k3, (mlps, n_out_g, n_hid_g), gain)
    b2 = _xavier_uniform(k4, (mlps, n_out_g), gain)
    return (w1, b1, w2, b2)


# ----------------------------- pure-JAX reference ------------------------------

_HI = jax.lax.Precision.HIGHEST


def _hyper_mlp_ref(x, params):
    w1, b1, w2, b2 = params
    M, H, F = w1.shape
    B, L, _ = x.shape
    xg = x.reshape(B, L, M, F)
    h = jnp.einsum('blmf,mhf->bmlh', xg, w1, precision=_HI) + b1[None, :, None, :]
    h = _gelu_exact(h)
    return jnp.einsum('bmlh,mfh->bmlf', h, w2, precision=_HI) + b2[None, :, None, :]


def hyper_mixer_ref(x, params, *, mlps, tied=False, eps=1e-5):
    w1_gen_params, w2_gen_params, ln_gamma, ln_beta = params
    B, n_in, d_in = x.shape
    W1 = _hyper_mlp_ref(jnp.swapaxes(x, 1, 2), w1_gen_params)
    W2 = W1 if tied else _hyper_mlp_ref(x, w2_gen_params)
    out = jnp.swapaxes(x, 1, 2).reshape(B * mlps, d_in // mlps, n_in)
    W1f = W1.reshape(B * mlps, n_in, -1)
    W2f = W2.reshape(B * mlps, n_in, -1)
    t = _gelu_exact(jnp.matmul(out, W1f, precision=_HI))
    t = jnp.matmul(t, jnp.swapaxes(W2f, 1, 2), precision=_HI)
    t = t.reshape(B, d_in, n_in)
    t = jnp.swapaxes(t, 1, 2)
    mean = t.mean(-1, keepdims=True)
    var = ((t - mean) ** 2).mean(-1, keepdims=True)
    return ((t - mean) / jnp.sqrt(var + eps)) * ln_gamma.reshape(1, 1, -1) \
        + ln_beta.reshape(1, 1, -1)


if __name__ == "__main__":
    # HyperMixer(d_in=32, d_hidden=32, n_in=16, n_hidden=32, mlps=2, tied=False)
    d_in, d_hidden = 32, 32
    n_in, n_hidden = 16, 32
    mlps = 2
    B = 2

    key = jax.random.PRNGKey(0)
    kx, kw1, kw2 = jax.random.split(key, 3)

    # x: (batch, n_in, d_in) — w1_gen consumes x.transpose(1,2), w2_gen consumes x.
    x = jax.random.normal(kx, (B, n_in, d_in), jnp.float32)

    w1_gen_params = init_hyper_mixer_params(kw1, n_in, n_hidden, n_in, mlps)
    w2_gen_params = init_hyper_mixer_params(kw2, d_in, d_hidden, d_in, mlps)
    ln_gamma = jnp.ones((1, d_in), jnp.float32)   # torch LayerNorm(d_in) init
    ln_beta = jnp.zeros((1, d_in), jnp.float32)
    params = (w1_gen_params, w2_gen_params, ln_gamma, ln_beta)

    out = hyper_mixer_forward(x, params, mlps=mlps, tied=False)
    out = jax.block_until_ready(out)

    # correctness check against the pure-JAX (PyTorch-equivalent) reference
    ref = hyper_mixer_ref(x, params, mlps=mlps, tied=False)
    assert out.shape == (B, n_in, d_in)
    max_err = float(jnp.max(jnp.abs(out - ref)))
    assert max_err < 1e-4, f"max abs error {max_err}"

    print("KERNEL_OK")
</pallas_src>

<mosaic_0001>
module attributes {stable_mosaic.version = 11 : i64} {
  func.func @_hyper_mixer_fused_kernel(%arg0: i32, %arg1: memref<1x16x32xf32, #tpu.memory_space<vmem>>, %arg2: memref<32x16xf32, #tpu.memory_space<vmem>>, %arg3: memref<32x1xf32, #tpu.memory_space<vmem>>, %arg4: memref<16x32xf32, #tpu.memory_space<vmem>>, %arg5: memref<16x1xf32, #tpu.memory_space<vmem>>, %arg6: memref<32x32xf32, #tpu.memory_space<vmem>>, %arg7: memref<1x32xf32, #tpu.memory_space<vmem>>, %arg8: memref<32x32xf32, #tpu.memory_space<vmem>>, %arg9: memref<1x32xf32, #tpu.memory_space<vmem>>, %arg10: memref<2x32x16xf32, #tpu.memory_space<vmem>>, %arg11: memref<2x32x16xf32, #tpu.memory_space<vmem>>, %arg12: memref<1x32xf32, #tpu.memory_space<vmem>>, %arg13: memref<1x32xf32, #tpu.memory_space<vmem>>, %arg14: memref<1x16x32xf32, #tpu.memory_space<vmem>>) attributes {dimension_semantics = [#tpu.dimension_semantics<parallel>], iteration_bounds = array<i64: 2>, scalar_prefetch = 0 : i64, scratch_operands = 0 : i64, tpu.core_type = #tpu.core_type<tc>, window_params = [{transform_indices = @transform_0, window_bounds = array<i64: 1, 16, 32>}, {pipeline_mode = #tpu.pipeline_mode<synchronous>, transform_indices = @transform_1, window_bounds = array<i64: 32, 16>}, {pipeline_mode = #tpu.pipeline_mode<synchronous>, transform_indices = @transform_2, window_bounds = array<i64: 32, 1>}, {pipeline_mode = #tpu.pipeline_mode<synchronous>, transform_indices = @transform_3, window_bounds = array<i64: 16, 32>}, {pipeline_mode = #tpu.pipeline_mode<synchronous>, transform_indices = @transform_4, window_bounds = array<i64: 16, 1>}, {pipeline_mode = #tpu.pipeline_mode<synchronous>, transform_indices = @transform_5, window_bounds = array<i64: 32, 32>}, {pipeline_mode = #tpu.pipeline_mode<synchronous>, transform_indices = @transform_6, window_bounds = array<i64: 1, 32>}, {pipeline_mode = #tpu.pipeline_mode<synchronous>, transform_indices = @transform_7, window_bounds = array<i64: 32, 32>}, {pipeline_mode = #tpu.pipeline_mode<synchronous>, transform_indices = @transform_8, window_bounds = array<i64: 1, 32>}, {pipeline_mode = #tpu.pipeline_mode<synchronous>, transform_indices = @transform_9, window_bounds = array<i64: 2, 32, 16>}, {pipeline_mode = #tpu.pipeline_mode<synchronous>, transform_indices = @transform_10, window_bounds = array<i64: 2, 32, 16>}, {pipeline_mode = #tpu.pipeline_mode<synchronous>, transform_indices = @transform_11, window_bounds = array<i64: 1, 32>}, {pipeline_mode = #tpu.pipeline_mode<synchronous>, transform_indices = @transform_12, window_bounds = array<i64: 1, 32>}, {transform_indices = @transform_13, window_bounds = array<i64: 1, 16, 32>}]} {
    %c0 = arith.constant 0 : index
    %c0_0 = arith.constant 0 : index
    %c0_1 = arith.constant 0 : index
    %0 = vector.load %arg1[%c0, %c0_0, %c0_1] : memref<1x16x32xf32, #tpu.memory_space<vmem>>, vector<1x16x32xf32>
    %1 = vector.shape_cast %0 : vector<1x16x32xf32> to vector<16x32xf32>
    %c0_2 = arith.constant 0 : index
    %c0_3 = arith.constant 0 : index
    %2 = vector.load %arg2[%c0_2, %c0_3] : memref<32x16xf32, #tpu.memory_space<vmem>>, vector<32x16xf32>
    %cst = arith.constant dense<0.000000e+00> : vector<32x32xf32>
    %3 = tpu.matmul %2, %1, %cst {dimension_numbers = #tpu.dot_dimension_numbers<[1], [0], [0], [1], [0, 0, 1, 1], [], []>} : vector<32x16xf32>, vector<16x32xf32>, vector<32x32xf32> -> vector<32x32xf32>
    %c0_4 = arith.constant 0 : index
    %c0_5 = arith.constant 0 : index
    %4 = vector.load %arg3[%c0_4, %c0_5] : memref<32x1xf32, #tpu.memory_space<vmem>>, vector<32x1xf32>
    %5 = vector.broadcast %4 : vector<32x1xf32> to vector<32x32xf32>
    %6 = arith.addf %3, %5 : vector<32x32xf32>
    %cst_6 = arith.constant 5.000000e-01 : f32
    %7 = vector.broadcast %cst_6 : f32 to vector<32x32xf32>
    %8 = arith.mulf %7, %6 : vector<32x32xf32>
    %cst_7 = arith.constant 0.707106769 : f32
    %9 = vector.broadcast %cst_7 : f32 to vector<32x32xf32>
    %10 = arith.mulf %6, %9 : vector<32x32xf32>
    %11 = math.erf %10 : vector<32x32xf32>
    %cst_8 = arith.constant 1.000000e+00 : f32
    %12 = vector.broadcast %cst_8 : f32 to vector<32x32xf32>
    %13 = arith.addf %12, %11 : vector<32x32xf32>
    %14 = arith.mulf %8, %13 : vector<32x32xf32>
    %c0_9 = arith.constant 0 : index
    %c0_10 = arith.constant 0 : index
    %15 = vector.load %arg4[%c0_9, %c0_10] : memref<16x32xf32, #tpu.memory_space<vmem>>, vector<16x32xf32>
    %cst_11 = arith.constant dense<0.000000e+00> : vector<16x32xf32>
    %16 = tpu.matmul %15, %14, %cst_11 {dimension_numbers = #tpu.dot_dimension_numbers<[1], [0], [0], [1], [0, 0, 1, 1], [], []>} : vector<16x32xf32>, vector<32x32xf32>, vector<16x32xf32> -> vector<16x32xf32>
    %c0_12 = arith.constant 0 : index
    %c0_13 = arith.constant 0 : index
    %17 = vector.load %arg5[%c0_12, %c0_13] : memref<16x1xf32, #tpu.memory_space<vmem>>, vector<16x1xf32>
    %18 = vector.broadcast %17 : vector<16x1xf32> to vector<16x32xf32>
    %19 = arith.addf %16, %18 : vector<16x32xf32>
    %c0_14 = arith.constant 0 : index
    %c0_15 = arith.constant 0 : index
    %c0_16 = arith.constant 0 : index
    %20 = vector.load %arg10[%c0_14, %c0_15, %c0_16] : memref<2x32x16xf32, #tpu.memory_space<vmem>>, vector<1x32x16xf32>
    %21 = vector.shape_cast %20 : vector<1x32x16xf32> to vector<32x16xf32>
    %cst_17 = arith.constant dense<0.000000e+00> : vector<16x16xf32>
    %22 = tpu.matmul %19, %21, %cst_17 {dimension_numbers = #tpu.dot_dimension_numbers<[1], [0], [0], [1], [0, 0, 1, 1], [], []>} : vector<16x32xf32>, vector<32x16xf32>, vector<16x16xf32> -> vector<16x16xf32>
    %c0_18 = arith.constant 0 : index
    %c0_19 = arith.constant 0 : index
    %c0_20 = arith.constant 0 : index
    %23 = vector.load %arg11[%c0_18, %c0_19, %c0_20] : memref<2x32x16xf32, #tpu.memory_space<vmem>>, vector<1x32x16xf32>
    %24 = vector.shape_cast %23 : vector<1x32x16xf32> to vector<32x16xf32>
    %cst_21 = arith.constant dense<0.000000e+00> : vector<32x16xf32>
    %25 = tpu.matmul %24, %22, %cst_21 {dimension_numbers = #tpu.dot_dimension_numbers<[1], [0], [0], [1], [0, 0, 1, 1], [], []>} : vector<32x16xf32>, vector<16x16xf32>, vector<32x16xf32> -> vector<32x16xf32>
    %c1 = arith.constant 1 : index
    %c0_22 = arith.constant 0 : index
    %c0_23 = arith.constant 0 : index
    %26 = vector.load %arg10[%c1, %c0_22, %c0_23] : memref<2x32x16xf32, #tpu.memory_space<vmem>>, vector<1x32x16xf32>
    %27 = vector.shape_cast %26 : vector<1x32x16xf32> to vector<32x16xf32>
    %cst_24 = arith.constant dense<0.000000e+00> : vector<16x16xf32>
    %28 = tpu.matmul %19, %27, %cst_24 {dimension_numbers = #tpu.dot_dimension_numbers<[1], [0], [0], [1], [0, 0, 1, 1], [], []>} : vector<16x32xf32>, vector<32x16xf32>, vector<16x16xf32> -> vector<16x16xf32>
    %c1_25 = arith.constant 1 : index
    %c0_26 = arith.constant 0 : index
    %c0_27 = arith.constant 0 : index
    %29 = vector.load %arg11[%c1_25, %c0_26, %c0_27] : memref<2x32x16xf32, #tpu.memory_space<vmem>>, vector<1x32x16xf32>
    %30 = vector.shape_cast %29 : vector<1x32x16xf32> to vector<32x16xf32>
    %cst_28 = arith.constant dense<0.000000e+00> : vector<32x16xf32>
    %31 = tpu.matmul %30, %28, %cst_28 {dimension_numbers = #tpu.dot_dimension_numbers<[1], [0], [0], [1], [0, 0, 1, 1], [], []>} : vector<32x16xf32>, vector<16x16xf32>, vector<32x16xf32> -> vector<32x16xf32>
    %32 = arith.addf %25, %31 : vector<32x16xf32>
    %c0_29 = arith.constant 0 : index
    %c0_30 = arith.constant 0 : index
    %33 = vector.load %arg6[%c0_29, %c0_30] : memref<32x32xf32, #tpu.memory_space<vmem>>, vector<32x32xf32>
    %cst_31 = arith.constant dense<0.000000e+00> : vector<16x32xf32>
    %34 = tpu.matmul %1, %33, %cst_31 {dimension_numbers = #tpu.dot_dimension_numbers<[1], [1], [0], [0], [0, 0, 1, 0], [], []>} : vector<16x32xf32>, vector<32x32xf32>, vector<16x32xf32> -> vector<16x32xf32>
    %c0_32 = arith.constant 0 : index
    %c0_33 = arith.constant 0 : index
    %35 = vector.load %arg7[%c0_32, %c0_33] : memref<1x32xf32, #tpu.memory_space<vmem>>, vector<1x32xf32>
    %36 = vector.broadcast %35 : vector<1x32xf32> to vector<16x32xf32>
    %37 = arith.addf %34, %36 : vector<16x32xf32>
    %cst_34 = arith.constant 5.000000e-01 : f32
    %38 = vector.broadcast %cst_34 : f32 to vector<16x32xf32>
    %39 = arith.mulf %38, %37 : vector<16x32xf32>
    %cst_35 = arith.constant 0.707106769 : f32
    %40 = vector.broadcast %cst_35 : f32 to vector<16x32xf32>
    %41 = arith.mulf %37, %40 : vector<16x32xf32>
    %42 = math.erf %41 : vector<16x32xf32>
    %cst_36 = arith.constant 1.000000e+00 : f32
    %43 = vector.broadcast %cst_36 : f32 to vector<16x32xf32>
    %44 = arith.addf %43, %42 : vector<16x32xf32>
    %45 = arith.mulf %39, %44 : vector<16x32xf32>
    %c0_37 = arith.constant 0 : index
    %c0_38 = arith.constant 0 : index
    %46 = vector.load %arg8[%c0_37, %c0_38] : memref<32x32xf32, #tpu.memory_space<vmem>>, vector<32x32xf32>
    %cst_39 = arith.constant dense<0.000000e+00> : vector<16x32xf32>
    %47 = tpu.matmul %45, %46, %cst_39 {dimension_numbers = #tpu.dot_dimension_numbers<[1], [1], [0], [0], [0, 0, 1, 0], [], []>} : vector<16x32xf32>, vector<32x32xf32>, vector<16x32xf32> -> vector<16x32xf32>
    %c0_40 = arith.constant 0 : index
    %c0_41 = arith.constant 0 : index
    %48 = vector.load %arg9[%c0_40, %c0_41] : memref<1x32xf32, #tpu.memory_space<vmem>>, vector<1x32xf32>
    %49 = vector.broadcast %48 : vector<1x32xf32> to vector<16x32xf32>
    %50 = arith.addf %47, %49 : vector<16x32xf32>
    %51 = vector.extract_strided_slice %32 {offsets = [0, 0], sizes = [16, 16], strides = [1, 1]} : vector<32x16xf32> to vector<16x16xf32>
    %52 = vector.extract_strided_slice %1 {offsets = [0, 0], sizes = [16, 16], strides = [1, 1]} : vector<16x32xf32> to vector<16x16xf32>
    %cst_42 = arith.constant dense<0.000000e+00> : vector<16x16xf32>
    %53 = tpu.matmul %51, %52, %cst_42 {dimension_numbers = #tpu.dot_dimension_numbers<[1], [0], [0], [1], [0, 0, 1, 1], [], []>} : vector<16x16xf32>, vector<16x16xf32>, vector<16x16xf32> -> vector<16x16xf32>
    %cst_43 = arith.constant 5.000000e-01 : f32
    %54 = vector.broadcast %cst_43 : f32 to vector<16x16xf32>
    %55 = arith.mulf %54, %53 : vector<16x16xf32>
    %cst_44 = arith.constant 0.707106769 : f32
    %56 = vector.broadcast %cst_44 : f32 to vector<16x16xf32>
    %57 = arith.mulf %53, %56 : vector<16x16xf32>
    %58 = math.erf %57 : vector<16x16xf32>
    %cst_45 = arith.constant 1.000000e+00 : f32
    %59 = vector.broadcast %cst_45 : f32 to vector<16x16xf32>
    %60 = arith.addf %59, %58 : vector<16x16xf32>
    %61 = arith.mulf %55, %60 : vector<16x16xf32>
    %62 = vector.extract_strided_slice %50 {offsets = [0, 0], sizes = [16, 16], strides = [1, 1]} : vector<16x32xf32> to vector<16x16xf32>
    %cst_46 = arith.constant dense<0.000000e+00> : vector<16x16xf32>
    %63 = tpu.matmul %62, %61, %cst_46 {dimension_numbers = #tpu.dot_dimension_numbers<[1], [0], [0], [1], [0, 0, 1, 1], [], []>} : vector<16x16xf32>, vector<16x16xf32>, vector<16x16xf32> -> vector<16x16xf32>
    %64 = vector.extract_strided_slice %32 {offsets = [16, 0], sizes = [16, 16], strides = [1, 1]} : vector<32x16xf32> to vector<16x16xf32>
    %65 = vector.extract_strided_slice %1 {offsets = [0, 16], sizes = [16, 16], strides = [1, 1]} : vector<16x32xf32> to vector<16x16xf32>
    %cst_47 = arith.constant dense<0.000000e+00> : vector<16x16xf32>
    %66 = tpu.matmul %64, %65, %cst_47 {dimension_numbers = #tpu.dot_dimension_numbers<[1], [0], [0], [1], [0, 0, 1, 1], [], []>} : vector<16x16xf32>, vector<16x16xf32>, vector<16x16xf32> -> vector<16x16xf32>
    %cst_48 = arith.constant 5.000000e-01 : f32
    %67 = vector.broadcast %cst_48 : f32 to vector<16x16xf32>
    %68 = arith.mulf %67, %66 : vector<16x16xf32>
    %cst_49 = arith.constant 0.707106769 : f32
    %69 = vector.broadcast %cst_49 : f32 to vector<16x16xf32>
    %70 = arith.mulf %66, %69 : vector<16x16xf32>
    %71 = math.erf %70 : vector<16x16xf32>
    %cst_50 = arith.constant 1.000000e+00 : f32
    %72 = vector.broadcast %cst_50 : f32 to vector<16x16xf32>
    %73 = arith.addf %72, %71 : vector<16x16xf32>
    %74 = arith.mulf %68, %73 : vector<16x16xf32>
    %75 = vector.extract_strided_slice %50 {offsets = [0, 16], sizes = [16, 16], strides = [1, 1]} : vector<16x32xf32> to vector<16x16xf32>
    %cst_51 = arith.constant dense<0.000000e+00> : vector<16x16xf32>
    %76 = tpu.matmul %75, %74, %cst_51 {dimension_numbers = #tpu.dot_dimension_numbers<[1], [0], [0], [1], [0, 0, 1, 1], [], []>} : vector<16x16xf32>, vector<16x16xf32>, vector<16x16xf32> -> vector<16x16xf32>
    %77 = tpu.concatenate %63, %76 in 1 : vector<16x16xf32>, vector<16x16xf32> -> vector<16x32xf32>
    %cst_52 = arith.constant dense<0.000000e+00> : vector<16xf32>
    %78 = vector.multi_reduction <add>, %77, %cst_52 [1] : vector<16x32xf32> to vector<16xf32>
    %79 = vector.shape_cast %78 : vector<16xf32> to vector<16x1xf32>
    %cst_53 = arith.constant 3.125000e-02 : f32
    %80 = vector.broadcast %cst_53 : f32 to vector<16x1xf32>
    %81 = arith.mulf %79, %80 : vector<16x1xf32>
    %82 = arith.mulf %77, %77 : vector<16x32xf32>
    %cst_54 = arith.constant dense<0.000000e+00> : vector<16xf32>
    %83 = vector.multi_reduction <add>, %82, %cst_54 [1] : vector<16x32xf32> to vector<16xf32>
    %84 = vector.shape_cast %83 : vector<16xf32> to vector<16x1xf32>
    %cst_55 = arith.constant 3.125000e-02 : f32
    %85 = vector.broadcast %cst_55 : f32 to vector<16x1xf32>
    %86 = arith.mulf %84, %85 : vector<16x1xf32>
    %87 = arith.mulf %81, %81 : vector<16x1xf32>
    %88 = arith.subf %86, %87 : vector<16x1xf32>
    %cst_56 = arith.constant 9.99999974E-6 : f32
    %89 = vector.broadcast %cst_56 : f32 to vector<16x1xf32>
    %90 = arith.addf %88, %89 : vector<16x1xf32>
    %91 = math.rsqrt %90 : vector<16x1xf32>
    %92 = vector.broadcast %81 : vector<16x1xf32> to vector<16x32xf32>
    %93 = arith.subf %77, %92 : vector<16x32xf32>
    %94 = vector.broadcast %91 : vector<16x1xf32> to vector<16x32xf32>
    %95 = arith.mulf %93, %94 : vector<16x32xf32>
    %c0_57 = arith.constant 0 : index
    %c0_58 = arith.constant 0 : index
    %96 = vector.load %arg12[%c0_57, %c0_58] : memref<1x32xf32, #tpu.memory_space<vmem>>, vector<1x32xf32>
    %97 = vector.broadcast %96 : vector<1x32xf32> to vector<16x32xf32>
    %98 = arith.mulf %95, %97 : vector<16x32xf32>
    %c0_59 = arith.constant 0 : index
    %c0_60 = arith.constant 0 : index
    %99 = vector.load %arg13[%c0_59, %c0_60] : memref<1x32xf32, #tpu.memory_space<vmem>>, vector<1x32xf32>
    %100 = vector.broadcast %99 : vector<1x32xf32> to vector<16x32xf32>
    %101 = arith.addf %98, %100 : vector<16x32xf32>
    %c0_61 = arith.constant 0 : index
    %c0_62 = arith.constant 0 : index
    %c0_63 = arith.constant 0 : index
    %102 = vector.load %arg14[%c0_61, %c0_62, %c0_63] : memref<1x16x32xf32, #tpu.memory_space<vmem>>, vector<1x16x32xf32>
    %103 = vector.shape_cast %102 : vector<1x16x32xf32> to vector<16x32xf32>
    %104 = vector.shape_cast %101 : vector<16x32xf32> to vector<1x16x32xf32>
    tpu.vector_store %arg14[%c0_61, %c0_62, %c0_63], %104 {strides = array<i32>} : memref<1x16x32xf32, #tpu.memory_space<vmem>>, vector<1x16x32xf32>,
    return
  }
  func.func @transform_0(%arg0: i32) -> (i32, i32, i32) {
    %c0_i32 = arith.constant 0 : i32
    %c0_i32_0 = arith.constant 0 : i32
    %c0_i32_1 = arith.constant 0 : i32
    return %arg0, %c0_i32, %c0_i32_0 : i32, i32, i32
  }
  func.func @transform_1(%arg0: i32) -> (i32, i32) {
    %c0_i32 = arith.constant 0 : i32
    %c0_i32_0 = arith.constant 0 : i32
    %c0_i32_1 = arith.constant 0 : i32
    return %c0_i32, %c0_i32_0 : i32, i32
  }
  func.func @transform_2(%arg0: i32) -> (i32, i32) {
    %c0_i32 = arith.constant 0 : i32
    %c0_i32_0 = arith.constant 0 : i32
    %c0_i32_1 = arith.constant 0 : i32
    return %c0_i32, %c0_i32_0 : i32, i32
  }
  func.func @transform_3(%arg0: i32) -> (i32, i32) {
    %c0_i32 = arith.constant 0 : i32
    %c0_i32_0 = arith.constant 0 : i32
    %c0_i32_1 = arith.constant 0 : i32
    return %c0_i32, %c0_i32_0 : i32, i32
  }
  func.func @transform_4(%arg0: i32) -> (i32, i32) {
    %c0_i32 = arith.constant 0 : i32
    %c0_i32_0 = arith.constant 0 : i32
    %c0_i32_1 = arith.constant 0 : i32
    return %c0_i32, %c0_i32_0 : i32, i32
  }
  func.func @transform_5(%arg0: i32) -> (i32, i32) {
    %c0_i32 = arith.constant 0 : i32
    %c0_i32_0 = arith.constant 0 : i32
    %c0_i32_1 = arith.constant 0 : i32
    return %c0_i32, %c0_i32_0 : i32, i32
  }
  func.func @transform_6(%arg0: i32) -> (i32, i32) {
    %c0_i32 = arith.constant 0 : i32
    %c0_i32_0 = arith.constant 0 : i32
    %c0_i32_1 = arith.constant 0 : i32
    return %c0_i32, %c0_i32_0 : i32, i32
  }
  func.func @transform_7(%arg0: i32) -> (i32, i32) {
    %c0_i32 = arith.constant 0 : i32
    %c0_i32_0 = arith.constant 0 : i32
    %c0_i32_1 = arith.constant 0 : i32
    return %c0_i32, %c0_i32_0 : i32, i32
  }
  func.func @transform_8(%arg0: i32) -> (i32, i32) {
    %c0_i32 = arith.constant 0 : i32
    %c0_i32_0 = arith.constant 0 : i32
    %c0_i32_1 = arith.constant 0 : i32
    return %c0_i32, %c0_i32_0 : i32, i32
  }
  func.func @transform_9(%arg0: i32) -> (i32, i32, i32) {
    %c0_i32 = arith.constant 0 : i32
    %c0_i32_0 = arith.constant 0 : i32
    %c0_i32_1 = arith.constant 0 : i32
    %c0_i32_2 = arith.constant 0 : i32
    return %c0_i32, %c0_i32_0, %c0_i32_1 : i32, i32, i32
  }
  func.func @transform_10(%arg0: i32) -> (i32, i32, i32) {
    %c0_i32 = arith.constant 0 : i32
    %c0_i32_0 = arith.constant 0 : i32
    %c0_i32_1 = arith.constant 0 : i32
    %c0_i32_2 = arith.constant 0 : i32
    return %c0_i32, %c0_i32_0, %c0_i32_1 : i32, i32, i32
  }
  func.func @transform_11(%arg0: i32) -> (i32, i32) {
    %c0_i32 = arith.constant 0 : i32
    %c0_i32_0 = arith.constant 0 : i32
    %c0_i32_1 = arith.constant 0 : i32
    return %c0_i32, %c0_i32_0 : i32, i32
  }
  func.func @transform_12(%arg0: i32) -> (i32, i32) {
    %c0_i32 = arith.constant 0 : i32
    %c0_i32_0 = arith.constant 0 : i32
    %c0_i32_1 = arith.constant 0 : i32
    return %c0_i32, %c0_i32_0 : i32, i32
  }
  func.func @transform_13(%arg0: i32) -> (i32, i32, i32) {
    %c0_i32 = arith.constant 0 : i32
    %c0_i32_0 = arith.constant 0 : i32
    %c0_i32_1 = arith.constant 0 : i32
    return %arg0, %c0_i32, %c0_i32_0 : i32, i32, i32
  }
}

</mosaic_0001>

<llo_original>
// kernel: hyper_mixer_forward.1
$region0: #{hyper_mixer_forward.1}
  #allocation0 [shape = 'u32[]', space=smem, size = 0x4, offset = 0x4, fixed_abs, tag = 'smem constant byte address 0x4 - core index']
  #allocation1 [shape = 'u32[144,128]{1,0:T(1,128)}', space=vmem, size = 0x12000, scoped, tag = 'internal scratch']
  %s0 = inlined_call_operand.vmem [shape: f32[2,16,32], index: 0, kind: input, shape index: {}]
  %s1 = inlined_call_operand.vmem [shape: f32[32,16], index: 1, kind: input, shape index: {}]
  %s2 = inlined_call_operand.vmem [shape: f32[32,1], index: 2, kind: input, shape index: {}]
  %s3 = inlined_call_operand.vmem [shape: f32[16,32], index: 3, kind: input, shape index: {}]
  %s4 = inlined_call_operand.vmem [shape: f32[16,1], index: 4, kind: input, shape index: {}]
  %s5 = inlined_call_operand.vmem [shape: f32[32,32], index: 5, kind: input, shape index: {}]
  %s6 = inlined_call_operand.vmem [shape: f32[1,32], index: 6, kind: input, shape index: {}]
  %s7 = inlined_call_operand.vmem [shape: f32[32,32], index: 7, kind: input, shape index: {}]
  %s8 = inlined_call_operand.vmem [shape: f32[1,32], index: 8, kind: input, shape index: {}]
  %s9 = inlined_call_operand.vmem [shape: f32[2,32,16], index: 9, kind: input, shape index: {}]
  %s10 = inlined_call_operand.vmem [shape: f32[2,32,16], index: 10, kind: input, shape index: {}]
  %s11 = inlined_call_operand.vmem [shape: f32[1,32], index: 11, kind: input, shape index: {}]
  %s12 = inlined_call_operand.vmem [shape: f32[1,32], index: 12, kind: input, shape index: {}]
  %s13 = inlined_call_operand.hbm [shape: f32[2,16,32], index: 13, kind: output, shape index: {}]
  %s14 = sld [smem:[#allocation0]]
  $region85: #{hyper_mixer_forward.1} parent=0
    _
  %s16 = ssub.s32 1, %s14
  %s17 = scalar_select 0, %s16, %s14
  $region1: #{hyper_mixer_forward.1} parent=0
    #allocation2 [shape = 'u8[16384]{0}', space=vmem, size = 0x4000, scoped, tag = 'output window, operand 0']
    #allocation3 [shape = 's32[2]{0}', space=sflag, size = 0x8, scoped, tag = 'scoped memory for hyper_mixer_forward.1']
    %18 = vsyncpa [#allocation3], 0
    %s19 = scalar_lea.sflag [#allocation3], 1
    %20 = vsyncpa %s19, 0
    loop: start=0, step=1, limit=4
    $region2: #{hyper_mixer_forward.1} parent=1 // loop_pre_header
      _
    $region3: #{hyper_mixer_forward.1} parent=1 // loop_header
      %s22 = sphi 0, %s26
      %p23 = scmp.ge.s32.totalorder %s22, 4
      %s32 = sphi 0, %s34
      %s35 = sphi 0, %s32
      %s36 = sphi 0, %s35
      %s52 = sphi 0, %s36
      %s56 = sphi 0, %s56
      %s58 = sphi 0, %s56
      %s59 = sphi 0, %s58
      %s73 = sphi 0, %s59
      %s77 = sphi 0, %s77
      %s79 = sphi 0, %s77
      %s80 = sphi 0, %s79
      %s94 = sphi 0, %s80
      %s98 = sphi 0, %s98
      %s100 = sphi 0, %s98
      %s101 = sphi 0, %s100
      %s115 = sphi 0, %s101
      %s119 = sphi 0, %s119
      %s121 = sphi 0, %s119
      %s122 = sphi 0, %s121
      %s136 = sphi 0, %s122
      %s140 = sphi 0, %s140
      %s142 = sphi 0, %s140
      %s143 = sphi 0, %s142
      %s157 = sphi 0, %s143
      %s161 = sphi 0, %s161
      %s163 = sphi 0, %s161
      %s164 = sphi 0, %s163
      %s178 = sphi 0, %s164
      %s182 = sphi 0, %s182
      %s184 = sphi 0, %s182
      %s185 = sphi 0, %s184
      %s199 = sphi 0, %s185
      %s203 = sphi 0, %s203
      %s205 = sphi 0, %s203
      %s206 = sphi 0, %s205
      %s220 = sphi 0, %s206
      %s224 = sphi 0, %s224
      %s226 = sphi 0, %s224
      %s227 = sphi 0, %s226
      %s241 = sphi 0, %s227
      %s245 = sphi 0, %s245
      %s247 = sphi 0, %s245
      %s248 = sphi 0, %s247
      %s262 = sphi 0, %s248
      %s266 = sphi 0, %s266
      %s268 = sphi 0, %s266
      %s269 = sphi 0, %s268
      %s283 = sphi 0, %s269
      %s287 = sphi 0, %s287
      %s289 = sphi 0, %s287
      %s290 = sphi 0, %s289
      %s304 = sphi 0, %s290
      %s310 = sphi 0, %s312
      %s313 = sphi 0, %s310
      %s314 = sphi 0, %s313
      %s330 = sphi 0, %s314
    $region4: #{hyper_mixer_forward.1} parent=1 // loop_header_branch
      %25 = sbr.rel (%p23) target = $region8
    $region5: #{hyper_mixer_forward.1} parent=1 // loop_body
      %s27 = ssub.s32 %s22, 1
      %s28 = ssub.s32 %s22, 2
      %s29 = sadd.s32 %s22, 1
      %s30 = ssub.s32 %s22, %s29
      %p31 = scmp.eq.s32.totalorder %s30, 0
      %s33 = sadd.s32 %s32, 1
      %s34 = scalar_select %p31, %s32, %s33
      %p37 = pneg %p31
      %p38 = scmp.eq.s32.totalorder %s22, 1
      %p39 = por %p37, %p38
      %p40 = scmp.ne.s32.totalorder %s32, %s35
      %p41 = scmp.eq.s32.totalorder %s22, 0
      %p42 = por %p40, %p41
      %p43 = scmp.ne.s32.totalorder %s32, %s35
      %p44 = scmp.eq.s32.totalorder %s27, 1
      %p45 = por %p43, %p44
      %p46 = scmp.ne.s32.totalorder %s35, %s36
      %p47 = scmp.eq.s32.totalorder %s27, 0
      %p48 = por %p46, %p47
      %p49 = scmp.ne.s32.totalorder %s35, %s36
      %p50 = scmp.eq.s32.totalorder %s28, 1
      %p51 = por %p49, %p50
      %p53 = scmp.ne.s32.totalorder %s36, %s52
      %p54 = scmp.eq.s32.totalorder %s28, 0
      %p55 = por %p53, %p54
      %s57 = sadd.s32 %s56, 1
      %p60 = scmp.eq.s32.totalorder %s22, 1
      %p61 = scmp.ne.s32.totalorder %s56, %s58
      %p62 = scmp.eq.s32.totalorder %s22, 0
      %p63 = por %p61, %p62
      %p64 = scmp.ne.s32.totalorder %s56, %s58
      %p65 = scmp.eq.s32.totalorder %s27, 1
      %p66 = por %p64, %p65
      %p67 = scmp.ne.s32.totalorder %s58, %s59
      %p68 = scmp.eq.s32.totalorder %s27, 0
      %p69 = por %p67, %p68
      %p70 = scmp.ne.s32.totalorder %s58, %s59
      %p71 = scmp.eq.s32.totalorder %s28, 1
      %p72 = por %p70, %p71
      %p74 = scmp.ne.s32.totalorder %s59, %s73
      %p75 = scmp.eq.s32.totalorder %s28, 0
      %p76 = por %p74, %p75
      %s78 = sadd.s32 %s77, 1
      %p81 = scmp.eq.s32.totalorder %s22, 1
      %p82 = scmp.ne.s32.totalorder %s77, %s79
      %p83 = scmp.eq.s32.totalorder %s22, 0
      %p84 = por %p82, %p83
      %p85 = scmp.ne.s32.totalorder %s77, %s79
      %p86 = scmp.eq.s32.totalorder %s27, 1
      %p87 = por %p85, %p86
      %p88 = scmp.ne.s32.totalorder %s79, %s80
      %p89 = scmp.eq.s32.totalorder %s27, 0
      %p90 = por %p88, %p89
      %p91 = scmp.ne.s32.totalorder %s79, %s80
      %p92 = scmp.eq.s32.totalorder %s28, 1
      %p93 = por %p91, %p92
      %p95 = scmp.ne.s32.totalorder %s80, %s94
      %p96 = scmp.eq.s32.totalorder %s28, 0
      %p97 = por %p95, %p96
      %s99 = sadd.s32 %s98, 1
      %p102 = scmp.eq.s32.totalorder %s22, 1
      %p103 = scmp.ne.s32.totalorder %s98, %s100
      %p104 = scmp.eq.s32.totalorder %s22, 0
      %p105 = por %p103, %p104
      %p106 = scmp.ne.s32.totalorder %s98, %s100
      %p107 = scmp.eq.s32.totalorder %s27, 1
      %p108 = por %p106, %p107
      %p109 = scmp.ne.s32.totalorder %s100, %s101
      %p110 = scmp.eq.s32.totalorder %s27, 0
      %p111 = por %p109, %p110
      %p112 = scmp.ne.s32.totalorder %s100, %s101
      %p113 = scmp.eq.s32.totalorder %s28, 1
      %p114 = por %p112, %p113
      %p116 = scmp.ne.s32.totalorder %s101, %s115
      %p117 = scmp.eq.s32.totalorder %s28, 0
      %p118 = por %p116, %p117
      %s120 = sadd.s32 %s119, 1
      %p123 = scmp.eq.s32.totalorder %s22, 1
      %p124 = scmp.ne.s32.totalorder %s119, %s121
      %p125 = scmp.eq.s32.totalorder %s22, 0
      %p126 = por %p124, %p125
      %p127 = scmp.ne.s32.totalorder %s119, %s121
      %p128 = scmp.eq.s32.totalorder %s27, 1
      %p129 = por %p127, %p128
      %p130 = scmp.ne.s32.totalorder %s121, %s122
      %p131 = scmp.eq.s32.totalorder %s27, 0
      %p132 = por %p130, %p131
      %p133 = scmp.ne.s32.totalorder %s121, %s122
      %p134 = scmp.eq.s32.totalorder %s28, 1
      %p135 = por %p133, %p134
      %p137 = scmp.ne.s32.totalorder %s122, %s136
      %p138 = scmp.eq.s32.totalorder %s28, 0
      %p139 = por %p137, %p138
      %s141 = sadd.s32 %s140, 1
      %p144 = scmp.eq.s32.totalorder %s22, 1
      %p145 = scmp.ne.s32.totalorder %s140, %s142
      %p146 = scmp.eq.s32.totalorder %s22, 0
      %p147 = por %p145, %p146
      %p148 = scmp.ne.s32.totalorder %s140, %s142
      %p149 = scmp.eq.s32.totalorder %s27, 1
      %p150 = por %p148, %p149
      %p151 = scmp.ne.s32.totalorder %s142, %s143
      %p152 = scmp.eq.s32.totalorder %s27, 0
      %p153 = por %p151, %p152
      %p154 = scmp.ne.s32.totalorder %s142, %s143
      %p155 = scmp.eq.s32.totalorder %s28, 1
      %p156 = por %p154, %p155
      %p158 = scmp.ne.s32.totalorder %s143, %s157
      %p159 = scmp.eq.s32.totalorder %s28, 0
      %p160 = por %p158, %p159
      %s162 = sadd.s32 %s161, 1
      %p165 = scmp.eq.s32.totalorder %s22, 1
      %p166 = scmp.ne.s32.totalorder %s161, %s163
      %p167 = scmp.eq.s32.totalorder %s22, 0
      %p168 = por %p166, %p167
      %p169 = scmp.ne.s32.totalorder %s161, %s163
      %p170 = scmp.eq.s32.totalorder %s27, 1
      %p171 = por %p169, %p170
      %p172 = scmp.ne.s32.totalorder %s163, %s164
      %p173 = scmp.eq.s32.totalorder %s27, 0
      %p174 = por %p172, %p173
      %p175 = scmp.ne.s32.totalorder %s163, %s164
      %p176 = scmp.eq.s32.totalorder %s28, 1
      %p177 = por %p175, %p176
      %p179 = scmp.ne.s32.totalorder %s164, %s178
      %p180 = scmp.eq.s32.totalorder %s28, 0
      %p181 = por %p179, %p180
      %s183 = sadd.s32 %s182, 1
      %p186 = scmp.eq.s32.totalorder %s22, 1
      %p187 = scmp.ne.s32.totalorder %s182, %s184
      %p188 = scmp.eq.s32.totalorder %s22, 0
      %p189 = por %p187, %p188
      %p190 = scmp.ne.s32.totalorder %s182, %s184
      %p191 = scmp.eq.s32.totalorder %s27, 1
      %p192 = por %p190, %p191
      %p193 = scmp.ne.s32.totalorder %s184, %s185
      %p194 = scmp.eq.s32.totalorder %s27, 0
      %p195 = por %p193, %p194
      %p196 = scmp.ne.s32.totalorder %s184, %s185
      %p197 = scmp.eq.s32.totalorder %s28, 1
      %p198 = por %p196, %p197
      %p200 = scmp.ne.s32.totalorder %s185, %s199
      %p201 = scmp.eq.s32.totalorder %s28, 0
      %p202 = por %p200, %p201
      %s204 = sadd.s32 %s203, 1
      %p207 = scmp.eq.s32.totalorder %s22, 1
      %p208 = scmp.ne.s32.totalorder %s203, %s205
      %p209 = scmp.eq.s32.totalorder %s22, 0
      %p210 = por %p208, %p209
      %p211 = scmp.ne.s32.totalorder %s203, %s205
      %p212 = scmp.eq.s32.totalorder %s27, 1
      %p213 = por %p211, %p212
      %p214 = scmp.ne.s32.totalorder %s205, %s206
      %p215 = scmp.eq.s32.totalorder %s27, 0
      %p216 = por %p214, %p215
      %p217 = scmp.ne.s32.totalorder %s205, %s206
      %p218 = scmp.eq.s32.totalorder %s28, 1
      %p219 = por %p217, %p218
      %p221 = scmp.ne.s32.totalorder %s206, %s220
      %p222 = scmp.eq.s32.totalorder %s28, 0
      %p223 = por %p221, %p222
      %s225 = sadd.s32 %s224, 1
      %p228 = scmp.eq.s32.totalorder %s22, 1
      %p229 = scmp.ne.s32.totalorder %s224, %s226
      %p230 = scmp.eq.s32.totalorder %s22, 0
      %p231 = por %p229, %p230
      %p232 = scmp.ne.s32.totalorder %s224, %s226
      %p233 = scmp.eq.s32.totalorder %s27, 1
      %p234 = por %p232, %p233
      %p235 = scmp.ne.s32.totalorder %s226, %s227
      %p236 = scmp.eq.s32.totalorder %s27, 0
      %p237 = por %p235, %p236
      %p238 = scmp.ne.s32.totalorder %s226, %s227
      %p239 = scmp.eq.s32.totalorder %s28, 1
      %p240 = por %p238, %p239
      %p242 = scmp.ne.s32.totalorder %s227, %s241
      %p243 = scmp.eq.s32.totalorder %s28, 0
      %p244 = por %p242, %p243
      %s246 = sadd.s32 %s245, 1
      %p249 = scmp.eq.s32.totalorder %s22, 1
      %p250 = scmp.ne.s32.totalorder %s245, %s247
      %p251 = scmp.eq.s32.totalorder %s22, 0
      %p252 = por %p250, %p251
      %p253 = scmp.ne.s32.totalorder %s245, %s247
      %p254 = scmp.eq.s32.totalorder %s27, 1
      %p255 = por %p253, %p254
      %p256 = scmp.ne.s32.totalorder %s247, %s248
      %p257 = scmp.eq.s32.totalorder %s27, 0
      %p258 = por %p256, %p257
      %p259 = scmp.ne.s32.totalorder %s247, %s248
      %p260 = scmp.eq.s32.totalorder %s28, 1
      %p261 = por %p259, %p260
      %p263 = scmp.ne.s32.totalorder %s248, %s262
      %p264 = scmp.eq.s32.totalorder %s28, 0
      %p265 = por %p263, %p264
      %s267 = sadd.s32 %s266, 1
      %p270 = scmp.eq.s32.totalorder %s22, 1
      %p271 = scmp.ne.s32.totalorder %s266, %s268
      %p272 = scmp.eq.s32.totalorder %s22, 0
      %p273 = por %p271, %p272
      %p274 = scmp.ne.s32.totalorder %s266, %s268
      %p275 = scmp.eq.s32.totalorder %s27, 1
      %p276 = por %p274, %p275
      %p277 = scmp.ne.s32.totalorder %s268, %s269
      %p278 = scmp.eq.s32.totalorder %s27, 0
      %p279 = por %p277, %p278
      %p280 = scmp.ne.s32.totalorder %s268, %s269
      %p281 = scmp.eq.s32.totalorder %s28, 1
      %p282 = por %p280, %p281
      %p284 = scmp.ne.s32.totalorder %s269, %s283
      %p285 = scmp.eq.s32.totalorder %s28, 0
      %p286 = por %p284, %p285
      %s288 = sadd.s32 %s287, 1
      %p291 = scmp.eq.s32.totalorder %s22, 1
      %p292 = scmp.ne.s32.totalorder %s287, %s289
      %p293 = scmp.eq.s32.totalorder %s22, 0
      %p294 = por %p292, %p293
      %p295 = scmp.ne.s32.totalorder %s287, %s289
      %p296 = scmp.eq.s32.totalorder %s27, 1
      %p297 = por %p295, %p296
      %p298 = scmp.ne.s32.totalorder %s289, %s290
      %p299 = scmp.eq.s32.totalorder %s27, 0
      %p300 = por %p298, %p299
      %p301 = scmp.ne.s32.totalorder %s289, %s290
      %p302 = scmp.eq.s32.totalorder %s28, 1
      %p303 = por %p301, %p302
      %p305 = scmp.ne.s32.totalorder %s290, %s304
      %p306 = scmp.eq.s32.totalorder %s28, 0
      %p307 = por %p305, %p306
      %s308 = ssub.s32 %s22, %s29
      %p309 = scmp.eq.s32.totalorder %s308, 0
      %s311 = sadd.s32 %s310, 1
      %s312 = scalar_select %p309, %s310, %s311
      %p315 = pneg %p309
      %p316 = scmp.eq.s32.totalorder %s22, 1
      %p317 = por %p315, %p316
      %p318 = scmp.ne.s32.totalorder %s310, %s313
      %p319 = scmp.eq.s32.totalorder %s22, 0
      %p320 = por %p318, %p319
      %p321 = scmp.ne.s32.totalorder %s310, %s313
      %p322 = scmp.eq.s32.totalorder %s27, 1
      %p323 = por %p321, %p322
      %p324 = scmp.ne.s32.totalorder %s313, %s314
      %p325 = scmp.eq.s32.totalorder %s27, 0
      %p326 = por %p324, %p325
      %p327 = scmp.ne.s32.totalorder %s313, %s314
      %p328 = scmp.eq.s32.totalorder %s28, 1
      %p329 = por %p327, %p328
      %p331 = scmp.ne.s32.totalorder %s314, %s330
      %p332 = scmp.eq.s32.totalorder %s28, 0
      %p333 = por %p331, %p332
      %p334 = scmp.le.s32.totalorder 1, %s22
      %p335 = scmp.lt.s32.totalorder %s22, 3
      %p336 = pnand %p334, %p335
      %p337 = pneg %p336
      // Predicated region
      $region9: #{hyper_mixer_forward.1} parent=5 // pred_check
        _
      $region10: #{hyper_mixer_forward.1} parent=5 // pred_check_branch
        %339 = sbr.rel (%p336) target = $region12
      $region11: #{hyper_mixer_forward.1} parent=5 // pred_region
        %s340 = ssub.s32 %s22, 1
        // Predicated region
        $region13: #{hyper_mixer_forward.1} parent=11 // pred_check
          %p341 = pneg %p69
        $region14: #{hyper_mixer_forward.1} parent=11 // pred_check_branch
          %343 = sbr.rel (%p341) target = $region16
        $region15: #{hyper_mixer_forward.1} parent=11 // pred_region
          _
        $region16: #{hyper_mixer_forward.1} parent=11 // pred_fallthru
          _
        // Predicated region
        $region17: #{hyper_mixer_forward.1} parent=11 // pred_check
          %p344 = pneg %p90
        $region18: #{hyper_mixer_forward.1} parent=11 // pred_check_branch
          %346 = sbr.rel (%p344) target = $region20
        $region19: #{hyper_mixer_forward.1} parent=11 // pred_region
          _
        $region20: #{hyper_mixer_forward.1} parent=11 // pred_fallthru
          _
        // Predicated region
        $region21: #{hyper_mixer_forward.1} parent=11 // pred_check
          %p347 = pneg %p111
        $region22: #{hyper_mixer_forward.1} parent=11 // pred_check_branch
          %349 = sbr.rel (%p347) target = $region24
        $region23: #{hyper_mixer_forward.1} parent=11 // pred_region
          _
        $region24: #{hyper_mixer_forward.1} parent=11 // pred_fallthru
          _
        // Predicated region
        $region25: #{hyper_mixer_forward.1} parent=11 // pred_check
          %p350 = pneg %p132
        $region26: #{hyper_mixer_forward.1} parent=11 // pred_check_branch
          %352 = sbr.rel (%p350) target = $region28
        $region27: #{hyper_mixer_forward.1} parent=11 // pred_region
          _
        $region28: #{hyper_mixer_forward.1} parent=11 // pred_fallthru
          _
        // Predicated region
        $region29: #{hyper_mixer_forward.1} parent=11 // pred_check
          %p353 = pneg %p153
        $region30: #{hyper_mixer_forward.1} parent=11 // pred_check_branch
          %355 = sbr.rel (%p353) target = $region32
        $region31: #{hyper_mixer_forward.1} parent=11 // pred_region
          _
        $region32: #{hyper_mixer_forward.1} parent=11 // pred_fallthru
          _
        // Predicated region
        $region33: #{hyper_mixer_forward.1} parent=11 // pred_check
          %p356 = pneg %p174
        $region34: #{hyper_mixer_forward.1} parent=11 // pred_check_branch
          %358 = sbr.rel (%p356) target = $region36
        $region35: #{hyper_mixer_forward.1} parent=11 // pred_region
          _
        $region36: #{hyper_mixer_forward.1} parent=11 // pred_fallthru
          _
        // Predicated region
        $region37: #{hyper_mixer_forward.1} parent=11 // pred_check
          %p359 = pneg %p195
        $region38: #{hyper_mixer_forward.1} parent=11 // pred_check_branch
          %361 = sbr.rel (%p359) target = $region40
        $region39: #{hyper_mixer_forward.1} parent=11 // pred_region
          _
        $region40: #{hyper_mixer_forward.1} parent=11 // pred_fallthru
          _
        // Predicated region
        $region41: #{hyper_mixer_forward.1} parent=11 // pred_check
          %p362 = pneg %p216
        $region42: #{hyper_mixer_forward.1} parent=11 // pred_check_branch
          %364 = sbr.rel (%p362) target = $region44
        $region43: #{hyper_mixer_forward.1} parent=11 // pred_region
          _
        $region44: #{hyper_mixer_forward.1} parent=11 // pred_fallthru
          _
        // Predicated region
        $region45: #{hyper_mixer_forward.1} parent=11 // pred_check
          %p365 = pneg %p237
        $region46: #{hyper_mixer_forward.1} parent=11 // pred_check_branch
          %367 = sbr.rel (%p365) target = $region48
        $region47: #{hyper_mixer_forward.1} parent=11 // pred_region
          _
        $region48: #{hyper_mixer_forward.1} parent=11 // pred_fallthru
          _
        // Predicated region
        $region49: #{hyper_mixer_forward.1} parent=11 // pred_check
          %p368 = pneg %p258
        $region50: #{hyper_mixer_forward.1} parent=11 // pred_check_branch
          %370 = sbr.rel (%p368) target = $region52
        $region51: #{hyper_mixer_forward.1} parent=11 // pred_region
          _
        $region52: #{hyper_mixer_forward.1} parent=11 // pred_fallthru
          _
        // Predicated region
        $region53: #{hyper_mixer_forward.1} parent=11 // pred_check
          %p371 = pneg %p279
        $region54: #{hyper_mixer_forward.1} parent=11 // pred_check_branch
          %373 = sbr.rel (%p371) target = $region56
        $region55: #{hyper_mixer_forward.1} parent=11 // pred_region
          _
        $region56: #{hyper_mixer_forward.1} parent=11 // pred_fallthru
          _
        // Predicated region
        $region57: #{hyper_mixer_forward.1} parent=11 // pred_check
          %p374 = pneg %p300
        $region58: #{hyper_mixer_forward.1} parent=11 // pred_check_branch
          %376 = sbr.rel (%p374) target = $region60
        $region59: #{hyper_mixer_forward.1} parent=11 // pred_region
          _
        $region60: #{hyper_mixer_forward.1} parent=11 // pred_fallthru
          _
      $region12: #{hyper_mixer_forward.1} parent=5 // pred_fallthru
        _
      %p377 = scmp.lt.s32.totalorder %s22, 2
      // Predicated region
      $region61: #{hyper_mixer_forward.1} parent=5 // pred_check
        %p378 = pneg %p377
      $region62: #{hyper_mixer_forward.1} parent=5 // pred_check_branch
        %380 = sbr.rel (%p378) target = $region64
      $region63: #{hyper_mixer_forward.1} parent=5 // pred_region
        // Predicated region
        $region65: #{hyper_mixer_forward.1} parent=63 // pred_check
          %p381 = pneg %p42
        $region66: #{hyper_mixer_forward.1} parent=63 // pred_check_branch
          %383 = sbr.rel (%p381) target = $region68
        $region67: #{hyper_mixer_forward.1} parent=63 // pred_region
          %p384 = scmp.lt.s32.totalorder %s22, 1
          %s385 = scalar_select %p384, %s22, 1
          %s386 = smul.addr %s385, 2
          %s387 = smul.addr %s386, 8
          %s388 = scalar_lea.vmem %s0, %s387
        $region68: #{hyper_mixer_forward.1} parent=63 // pred_fallthru
          _
      $region64: #{hyper_mixer_forward.1} parent=5 // pred_fallthru
        _
      %p389 = scmp.le.s32.totalorder 1, %s22
      %p390 = scmp.lt.s32.totalorder %s22, 3
      %p391 = pnand %p389, %p390
      %p392 = pneg %p391
      // Predicated region
      $region69: #{hyper_mixer_forward.1} parent=5 // pred_check
        _
      $region70: #{hyper_mixer_forward.1} parent=5 // pred_check_branch
        %394 = sbr.rel (%p391) target = $region72
      $region71: #{hyper_mixer_forward.1} parent=5 // pred_region
        %s395 = ssub.s32 %s22, 1
        %p396 = scmp.lt.s32.totalorder %s27, 1
        %s397 = scalar_select %p396, %s27, 1
        %s398 = smul.addr %s397, 2
        %s399 = smul.addr %s398, 8
        %s400 = scalar_lea.vmem %s0, %s399
        %p401 = pneg %p48
        %p402 = pneg %p45
        %p403 = pneg %p69
        %p404 = pneg %p66
        %p405 = pneg %p90
        %p406 = pneg %p87
        %p407 = pneg %p111
        %p408 = pneg %p108
        %p409 = pneg %p132
        %p410 = pneg %p129
        %p411 = pneg %p153
        %p412 = pneg %p150
        %p413 = pneg %p174
        %p414 = pneg %p171
        %p415 = pneg %p195
        %p416 = pneg %p192
        %p417 = pneg %p216
        %p418 = pneg %p213
        %p419 = pneg %p237
        %p420 = pneg %p234
        %p421 = pneg %p258
        %p422 = pneg %p255
        %p423 = pneg %p279
        %p424 = pneg %p276
        %p425 = pneg %p300
        %p426 = pneg %p297
        %p427 = pneg %p326
        %p428 = pneg %p323
        %s429 = sand.u32 %s313, 1
        %s430 = scalar_lea.sflag [#allocation3], %s429
        %s431 = sand.u32 %s313, 1
        %s432 = smul.addr %s431, 16
        %s433 = scalar_lea.vmem [#allocation2], %s432
        %p434 = scmp.lt.s32.totalorder %s27, 1
        %s435 = scalar_select %p434, %s27, 1
        %s436 = smul.addr %s435, 2
        %s437 = smul.addr %s436, 8
        %s438 = scalar_lea.vmem %s0, %s437
        %v439 = vld [vmem:[%s438] sm:$0xff]
        %v440 = vld [vmem:[%s438 + $0x8] sm:$0xff]
        %v441 = vld [vmem:[%s1] sm:$0xff]
        %v442 = vld [vmem:[%s1 + $0x8] sm:$0xff]
        %v443 = vld [vmem:[%s1 + $0x10] sm:$0xff]
        %v444 = vld [vmem:[%s1 + $0x18] sm:$0xff]
        %v445 = vld [vmem:[%s2] sm:$0xff]
        %v446 = vld [vmem:[%s2 + $0x8] sm:$0xff]
        %v447 = vld [vmem:[%s2 + $0x10] sm:$0xff]
        %v448 = vld [vmem:[%s2 + $0x18] sm:$0xff]
        %450 = vset.pattern.permute.xlu0 0
        %451 = vperm.xlu0 %450, %v445
        %v452 = vpop.permute.xlu0 %451
        %455 = vset.pattern.permute.xlu0 0
        %456 = vperm.xlu0 %455, %v446
        %v457 = vpop.permute.xlu0 %456
        %460 = vset.pattern.permute.xlu0 0
        %461 = vperm.xlu0 %460, %v447
        %v462 = vpop.permute.xlu0 %461
        %465 = vset.pattern.permute.xlu0 0
        %466 = vperm.xlu0 %465, %v448
        %v467 = vpop.permute.xlu0 %466
        %vm469 = vcmask 130048
        %v471 = vsel %vm469, %v441, 0
        %v474 = vsel %vm469, %v442, 0
        %v477 = vsel %vm469, %v443, 0
        %v480 = vsel %vm469, %v444, 0
        %482 = vmatprep.subr.mxu0 0.0
        %483 = vmatpush1.msra.mxu0 %v439
        %484 = vmatprep.subr.mxu0 0.0
        %485 = vmatpush1.msra.mxu0 %v440
        %486 = vmatprep.subr.mxu0 0.0
        %487 = vmatpush1.msra.mxu0 0.0
        %488 = vmatprep.subr.mxu0 0.0
        %489 = vmatpush1.msra.mxu0 0.0
        %490 = vmatprep.subr.mxu0 0.0
        %491 = vmatpush1.msra.mxu0 0.0
        %492 = vmatprep.subr.mxu0 0.0
        %493 = vmatpush1.msra.mxu0 0.0
        %494 = vmatprep.subr.mxu0 0.0
        %495 = vmatpush1.msra.mxu0 0.0
        %496 = vmatprep.subr.mxu0 0.0
        %497 = vmatpush1.msra.mxu0 0.0
        %498 = vmatprep.subr.mxu0 0.0
        %499 = vmatpush1.msra.mxu0 0.0
        %500 = vmatprep.subr.mxu0 0.0
        %501 = vmatpush1.msra.mxu0 0.0
        %502 = vmatprep.subr.mxu0 0.0
        %503 = vmatpush1.msra.mxu0 0.0
        %504 = vmatprep.subr.mxu0 0.0
        %505 = vmatpush1.msra.mxu0 0.0
        %506 = vmatprep.subr.mxu0 0.0
        %507 = vmatpush1.msra.mxu0 0.0
        %508 = vmatprep.subr.mxu0 0.0
        %509 = vmatpush1.msra.mxu0 0.0
        %510 = vmatprep.subr.mxu0 0.0
        %511 = vmatpush1.msra.mxu0 0.0
        %512 = vmatprep.subr.mxu0 0.0
        %513 = vmatpush1.msra.mxu0 0.0
        %514 = vmatprep.subr.mxu0 0.0
        %515 = vmatpush1.msra.mxu0 0.0
        %516 = vmatprep.subr.mxu0 0.0
        %517 = vmatpush1.msra.mxu0 0.0
        %518 = vmatprep.subr.mxu0 0.0
        %519 = vmatpush1.msra.mxu0 0.0
        %520 = vmatprep.subr.mxu0 0.0
        %521 = vmatpush1.msra.mxu0 0.0
        %522 = vmatprep.subr.mxu0 0.0
        %523 = vmatpush1.msra.mxu0 0.0
        %524 = vmatprep.subr.mxu0 0.0
        %525 = vmatpush1.msra.mxu0 0.0
        %526 = vmatprep.subr.mxu0 0.0
        %527 = vmatpush1.msra.mxu0 0.0
        %528 = vmatprep.subr.mxu0 0.0
        %529 = vmatpush1.msra.mxu0 0.0
        %530 = vmatprep.subr.mxu0 0.0
        %531 = vmatpush1.msra.mxu0 0.0
        %532 = vmatprep.subr.mxu0 0.0
        %533 = vmatpush1.msra.mxu0 0.0
        %534 = vmatprep.subr.mxu0 0.0
        %535 = vmatpush1.msra.mxu0 0.0
        %536 = vmatprep.subr.mxu0 0.0
        %537 = vmatpush1.msra.mxu0 0.0
        %538 = vmatprep.subr.mxu0 0.0
        %539 = vmatpush1.msra.mxu0 0.0
        %540 = vmatprep.subr.mxu0 0.0
        %541 = vmatpush1.msra.mxu0 0.0
        %542 = vmatprep.subr.mxu0 0.0
        %543 = vmatpush1.msra.mxu0 0.0
        %544 = vmatprep.subr.mxu0 0.0
        %545 = vmatpush1.msra.mxu0 0.0
        %546 = vmatprep.mubr.f32.mxu0 0.0
        %547 = vmatmul.mubr.f32.gmra.mrb[0].mxu0 %v471
        %v548 = vpop.f32.mrb[0].mxu0
        %v549 = vadd.f32 %v452, %v548
        %v550 = vpop.f32.mrb[0].mxu0
        %551 = vmatprep.mubr.f32.mxu0 0.0
        %552 = vmatmul.mubr.f32.gmra.mrb[0].mxu0 %v474
        %v553 = vpop.f32.mrb[0].mxu0
        %v554 = vadd.f32 %v457, %v553
        %v555 = vpop.f32.mrb[0].mxu0
        %556 = vmatprep.mubr.f32.mxu0 0.0
        %557 = vmatmul.mubr.f32.gmra.mrb[0].mxu0 %v477
        %v558 = vpop.f32.mrb[0].mxu0
        %v559 = vadd.f32 %v462, %v558
        %v560 = vpop.f32.mrb[0].mxu0
        %561 = vmatprep.mubr.f32.mxu0 0.0
        %562 = vmatmul.mubr.f32.gmra.mrb[0].mxu0 %v480
        %v563 = vpop.f32.mrb[0].mxu0
        %v564 = vadd.f32 %v467, %v563
        %v565 = vpop.f32.mrb[0].mxu0
        %566 = vdwg.mxu0
        %v567 = vmul.f32 %v549, 0.5
        %v568 = vmul.f32 %v554, 0.5
        %v569 = vmul.f32 %v559, 0.5
        %v570 = vmul.f32 %v564, 0.5
        %v571 = vmul.f32 %v549, 0.70710677
        %v572 = vmul.f32 %v554, 0.70710677
        %v573 = vmul.f32 %v559, 0.70710677
        %v574 = vmul.f32 %v564, 0.70710677
        %v575 = verf.f32.pop %v571
        %v576 = verf.f32.pop %v572
        %v577 = verf.f32.pop %v573
        %v578 = verf.f32.pop %v574
        %v579 = vadd.f32 %v575, 1.0
        %v580 = vadd.f32 %v576, 1.0
        %v581 = vadd.f32 %v577, 1.0
        %v582 = vadd.f32 %v578, 1.0
        %v583 = vmul.f32 %v567, %v579
        %v584 = vmul.f32 %v568, %v580
        %v585 = vmul.f32 %v569, %v581
        %v586 = vmul.f32 %v570, %v582
        %v587 = vld [vmem:[%s3] sm:$0xff]
        %v588 = vld [vmem:[%s3 + $0x8] sm:$0xff]
        %v589 = vld [vmem:[%s4] sm:$0xff]
        %v590 = vld [vmem:[%s4 + $0x8] sm:$0xff]
        %592 = vset.pattern.permute.xlu0 0
        %593 = vperm.xlu0 %592, %v589
        %v594 = vpop.permute.xlu0 %593
        %597 = vset.pattern.permute.xlu0 0
        %598 = vperm.xlu0 %597, %v590
        %v599 = vpop.permute.xlu0 %598
        %vm601 = vcmask 261120
        %v603 = vsel %vm601, %v587, 0
        %v606 = vsel %vm601, %v588, 0
        %608 = vmatprep.subr.mxu0 0.0
        %609 = vmatpush1.msra.mxu0 %v583
        %610 = vmatprep.subr.mxu0 0.0
        %611 = vmatpush1.msra.mxu0 %v584
        %612 = vmatprep.subr.mxu0 0.0
        %613 = vmatpush1.msra.mxu0 %v585
        %614 = vmatprep.subr.mxu0 0.0
        %615 = vmatpush1.msra.mxu0 %v586
        %616 = vmatprep.subr.mxu0 0.0
        %617 = vmatpush1.msra.mxu0 0.0
        %618 = vmatprep.subr.mxu0 0.0
        %619 = vmatpush1.msra.mxu0 0.0
        %620 = vmatprep.subr.mxu0 0.0
        %621 = vmatpush1.msra.mxu0 0.0
        %622 = vmatprep.subr.mxu0 0.0
        %623 = vmatpush1.msra.mxu0 0.0
        %624 = vmatprep.subr.mxu0 0.0
        %625 = vmatpush1.msra.mxu0 0.0
        %626 = vmatprep.subr.mxu0 0.0
        %627 = vmatpush1.msra.mxu0 0.0
        %628 = vmatprep.subr.mxu0 0.0
        %629 = vmatpush1.msra.mxu0 0.0
        %630 = vmatprep.subr.mxu0 0.0
        %631 = vmatpush1.msra.mxu0 0.0
        %632 = vmatprep.subr.mxu0 0.0
        %633 = vmatpush1.msra.mxu0 0.0
        %634 = vmatprep.subr.mxu0 0.0
        %635 = vmatpush1.msra.mxu0 0.0
        %636 = vmatprep.subr.mxu0 0.0
        %637 = vmatpush1.msra.mxu0 0.0
        %638 = vmatprep.subr.mxu0 0.0
        %639 = vmatpush1.msra.mxu0 0.0
        %640 = vmatprep.subr.mxu0 0.0
        %641 = vmatpush1.msra.mxu0 0.0
        %642 = vmatprep.subr.mxu0 0.0
        %643 = vmatpush1.msra.mxu0 0.0
        %644 = vmatprep.subr.mxu0 0.0
        %645 = vmatpush1.msra.mxu0 0.0
        %646 = vmatprep.subr.mxu0 0.0
        %647 = vmatpush1.msra.mxu0 0.0
        %648 = vmatprep.subr.mxu0 0.0
        %649 = vmatpush1.msra.mxu0 0.0
        %650 = vmatprep.subr.mxu0 0.0
        %651 = vmatpush1.msra.mxu0 0.0
        %652 = vmatprep.subr.mxu0 0.0
        %653 = vmatpush1.msra.mxu0 0.0
        %654 = vmatprep.subr.mxu0 0.0
        %655 = vmatpush1.msra.mxu0 0.0
        %656 = vmatprep.subr.mxu0 0.0
        %657 = vmatpush1.msra.mxu0 0.0
        %658 = vmatprep.subr.mxu0 0.0
        %659 = vmatpush1.msra.mxu0 0.0
        %660 = vmatprep.subr.mxu0 0.0
        %661 = vmatpush1.msra.mxu0 0.0
        %662 = vmatprep.subr.mxu0 0.0
        %663 = vmatpush1.msra.mxu0 0.0
        %664 = vmatprep.subr.mxu0 0.0
        %665 = vmatpush1.msra.mxu0 0.0
        %666 = vmatprep.subr.mxu0 0.0
        %667 = vmatpush1.msra.mxu0 0.0
        %668 = vmatprep.subr.mxu0 0.0
        %669 = vmatpush1.msra.mxu0 0.0
        %670 = vmatprep.subr.mxu0 0.0
        %671 = vmatpush1.msra.mxu0 0.0
        %672 = vmatprep.mubr.f32.mxu0 0.0
        %673 = vmatmul.mubr.f32.gmra.mrb[0].mxu0 %v603
        %v674 = vpop.f32.mrb[0].mxu0
        %v675 = vadd.f32 %v594, %v674
        %v676 = vpop.f32.mrb[0].mxu0
        %677 = vmatprep.mubr.f32.mxu0 0.0
        %678 = vmatmul.mubr.f32.gmra.mrb[0].mxu0 %v606
        %v679 = vpop.f32.mrb[0].mxu0
        %v680 = vadd.f32 %v599, %v679
        %v681 = vpop.f32.mrb[0].mxu0
        %682 = vdwg.mxu0
        %v683 = vld [vmem:[%s9] sm:$0xff]
        %v684 = vld [vmem:[%s9 + $0x8] sm:$0xff]
        %v685 = vld [vmem:[%s9 + $0x10] sm:$0xff]
        %v686 = vld [vmem:[%s9 + $0x18] sm:$0xff]
        %v688 = vsel %vm601, %v675, 0
        %v691 = vsel %vm601, %v680, 0
        %693 = vmatprep.subr.mxu0 0.0
        %694 = vmatpush1.msra.mxu0 %v683
        %695 = vmatprep.subr.mxu0 0.0
        %696 = vmatpush1.msra.mxu0 %v684
        %697 = vmatprep.subr.mxu0 0.0
        %698 = vmatpush1.msra.mxu0 %v685
        %699 = vmatprep.subr.mxu0 0.0
        %700 = vmatpush1.msra.mxu0 %v686
        %701 = vmatprep.subr.mxu0 0.0
        %702 = vmatpush1.msra.mxu0 0.0
        %703 = vmatprep.subr.mxu0 0.0
        %704 = vmatpush1.msra.mxu0 0.0
        %705 = vmatprep.subr.mxu0 0.0
        %706 = vmatpush1.msra.mxu0 0.0
        %707 = vmatprep.subr.mxu0 0.0
        %708 = vmatpush1.msra.mxu0 0.0
        %709 = vmatprep.subr.mxu0 0.0
        %710 = vmatpush1.msra.mxu0 0.0
        %711 = vmatprep.subr.mxu0 0.0
        %712 = vmatpush1.msra.mxu0 0.0
        %713 = vmatprep.subr.mxu0 0.0
        %714 = vmatpush1.msra.mxu0 0.0
        %715 = vmatprep.subr.mxu0 0.0
        %716 = vmatpush1.msra.mxu0 0.0
        %717 = vmatprep.subr.mxu0 0.0
        %718 = vmatpush1.msra.mxu0 0.0
        %719 = vmatprep.subr.mxu0 0.0
        %720 = vmatpush1.msra.mxu0 0.0
        %721 = vmatprep.subr.mxu0 0.0
        %722 = vmatpush1.msra.mxu0 0.0
        %723 = vmatprep.subr.mxu0 0.0
        %724 = vmatpush1.msra.mxu0 0.0
        %725 = vmatprep.subr.mxu0 0.0
        %726 = vmatpush1.msra.mxu0 0.0
        %727 = vmatprep.subr.mxu0 0.0
        %728 = vmatpush1.msra.mxu0 0.0
        %729 = vmatprep.subr.mxu0 0.0
        %730 = vmatpush1.msra.mxu0 0.0
        %731 = vmatprep.subr.mxu0 0.0
        %732 = vmatpush1.msra.mxu0 0.0
        %733 = vmatprep.subr.mxu0 0.0
        %734 = vmatpush1.msra.mxu0 0.0
        %735 = vmatprep.subr.mxu0 0.0
        %736 = vmatpush1.msra.mxu0 0.0
        %737 = vmatprep.subr.mxu0 0.0
        %738 = vmatpush1.msra.mxu0 0.0
        %739 = vmatprep.subr.mxu0 0.0
        %740 = vmatpush1.msra.mxu0 0.0
        %741 = vmatprep.subr.mxu0 0.0
        %742 = vmatpush1.msra.mxu0 0.0
        %743 = vmatprep.subr.mxu0 0.0
        %744 = vmatpush1.msra.mxu0 0.0
        %745 = vmatprep.subr.mxu0 0.0
        %746 = vmatpush1.msra.mxu0 0.0
        %747 = vmatprep.subr.mxu0 0.0
        %748 = vmatpush1.msra.mxu0 0.0
        %749 = vmatprep.subr.mxu0 0.0
        %750 = vmatpush1.msra.mxu0 0.0
        %751 = vmatprep.subr.mxu0 0.0
        %752 = vmatpush1.msra.mxu0 0.0
        %753 = vmatprep.subr.mxu0 0.0
        %754 = vmatpush1.msra.mxu0 0.0
        %755 = vmatprep.subr.mxu0 0.0
        %756 = vmatpush1.msra.mxu0 0.0
        %757 = vmatprep.mubr.f32.mxu0 0.0
        %758 = vmatmul.mubr.f32.gmra.mrb[0].mxu0 %v688
        %v759 = vpop.f32.mrb[0].mxu0
        %v760 = vadd.f32 0.0, %v759
        %v761 = vpop.f32.mrb[0].mxu0
        %762 = vmatprep.mubr.f32.mxu0 0.0
        %763 = vmatmul.mubr.f32.gmra.mrb[0].mxu0 %v691
        %v764 = vpop.f32.mrb[0].mxu0
        %v765 = vadd.f32 0.0, %v764
        %v766 = vpop.f32.mrb[0].mxu0
        %767 = vdwg.mxu0
        %v768 = vld [vmem:[%s10] sm:$0xff]
        %v769 = vld [vmem:[%s10 + $0x8] sm:$0xff]
        %v770 = vld [vmem:[%s10 + $0x10] sm:$0xff]
        %v771 = vld [vmem:[%s10 + $0x18] sm:$0xff]
        %s772 = scalar_lea.vmem %s9, 32
        %v773 = vld [vmem:[%s772] sm:$0xff]
        %v774 = vld [vmem:[%s772 + $0x8] sm:$0xff]
        %v775 = vld [vmem:[%s772 + $0x10] sm:$0xff]
        %v776 = vld [vmem:[%s772 + $0x18] sm:$0xff]
        %777 = vmatprep.subr.mxu0 0.0
        %778 = vmatpush1.msra.mxu0 %v773
        %779 = vmatprep.subr.mxu0 0.0
        %780 = vmatpush1.msra.mxu0 %v774
        %781 = vmatprep.subr.mxu0 0.0
        %782 = vmatpush1.msra.mxu0 %v775
        %783 = vmatprep.subr.mxu0 0.0
        %784 = vmatpush1.msra.mxu0 %v776
        %785 = vmatprep.subr.mxu0 0.0
        %786 = vmatpush1.msra.mxu0 0.0
        %787 = vmatprep.subr.mxu0 0.0
        %788 = vmatpush1.msra.mxu0 0.0
        %789 = vmatprep.subr.mxu0 0.0
        %790 = vmatpush1.msra.mxu0 0.0
        %791 = vmatprep.subr.mxu0 0.0
        %792 = vmatpush1.msra.mxu0 0.0
        %793 = vmatprep.subr.mxu0 0.0
        %794 = vmatpush1.msra.mxu0 0.0
        %795 = vmatprep.subr.mxu0 0.0
        %796 = vmatpush1.msra.mxu0 0.0
        %797 = vmatprep.subr.mxu0 0.0
        %798 = vmatpush1.msra.mxu0 0.0
        %799 = vmatprep.subr.mxu0 0.0
        %800 = vmatpush1.msra.mxu0 0.0
        %801 = vmatprep.subr.mxu0 0.0
        %802 = vmatpush1.msra.mxu0 0.0
        %803 = vmatprep.subr.mxu0 0.0
        %804 = vmatpush1.msra.mxu0 0.0
        %805 = vmatprep.subr.mxu0 0.0
        %806 = vmatpush1.msra.mxu0 0.0
        %807 = vmatprep.subr.mxu0 0.0
        %808 = vmatpush1.msra.mxu0 0.0
        %809 = vmatprep.subr.mxu0 0.0
        %810 = vmatpush1.msra.mxu0 0.0
        %811 = vmatprep.subr.mxu0 0.0
        %812 = vmatpush1.msra.mxu0 0.0
        %813 = vmatprep.subr.mxu0 0.0
        %814 = vmatpush1.msra.mxu0 0.0
        %815 = vmatprep.subr.mxu0 0.0
        %816 = vmatpush1.msra.mxu0 0.0
        %817 = vmatprep.subr.mxu0 0.0
        %818 = vmatpush1.msra.mxu0 0.0
        %819 = vmatprep.subr.mxu0 0.0
        %820 = vmatpush1.msra.mxu0 0.0
        %821 = vmatprep.subr.mxu0 0.0
        %822 = vmatpush1.msra.mxu0 0.0
        %823 = vmatprep.subr.mxu0 0.0
        %824 = vmatpush1.msra.mxu0 0.0
        %825 = vmatprep.subr.mxu0 0.0
        %826 = vmatpush1.msra.mxu0 0.0
        %827 = vmatprep.subr.mxu0 0.0
        %828 = vmatpush1.msra.mxu0 0.0
        %829 = vmatprep.subr.mxu0 0.0
        %830 = vmatpush1.msra.mxu0 0.0
        %831 = vmatprep.subr.mxu0 0.0
        %832 = vmatpush1.msra.mxu0 0.0
        %833 = vmatprep.subr.mxu0 0.0
        %834 = vmatpush1.msra.mxu0 0.0
        %835 = vmatprep.subr.mxu0 0.0
        %836 = vmatpush1.msra.mxu0 0.0
        %837 = vmatprep.subr.mxu0 0.0
        %838 = vmatpush1.msra.mxu0 0.0
        %839 = vmatprep.subr.mxu0 0.0
        %840 = vmatpush1.msra.mxu0 0.0
        %841 = vmatprep.mubr.f32.mxu0 0.0
        %842 = vmatmul.mubr.f32.gmra.mrb[0].mxu0 %v688
        %v843 = vpop.f32.mrb[0].mxu0
        %v844 = vadd.f32 0.0, %v843
        %v845 = vpop.f32.mrb[0].mxu0
        %846 = vmatprep.mubr.f32.mxu0 0.0
        %847 = vmatmul.mubr.f32.gmra.mrb[0].mxu0 %v691
        %v848 = vpop.f32.mrb[0].mxu0
        %v849 = vadd.f32 0.0, %v848
        %v850 = vpop.f32.mrb[0].mxu0
        %851 = vdwg.mxu0
        %s852 = scalar_lea.vmem %s10, 32
        %v853 = vld [vmem:[%s852] sm:$0xff]
        %v854 = vld [vmem:[%s852 + $0x8] sm:$0xff]
        %v855 = vld [vmem:[%s852 + $0x10] sm:$0xff]
        %v856 = vld [vmem:[%s852 + $0x18] sm:$0xff]
        %v858 = vsel %vm469, %v853, 0
        %v861 = vsel %vm469, %v854, 0
        %v864 = vsel %vm469, %v855, 0
        %v867 = vsel %vm469, %v856, 0
        %869 = vmatprep.subr.mxu0 0.0
        %870 = vmatpush1.msra.mxu0 %v844
        %871 = vmatprep.subr.mxu0 0.0
        %872 = vmatpush1.msra.mxu0 %v849
        %873 = vmatprep.subr.mxu0 0.0
        %874 = vmatpush1.msra.mxu0 0.0
        %875 = vmatprep.subr.mxu0 0.0
        %876 = vmatpush1.msra.mxu0 0.0
        %877 = vmatprep.subr.mxu0 0.0
        %878 = vmatpush1.msra.mxu0 0.0
        %879 = vmatprep.subr.mxu0 0.0
        %880 = vmatpush1.msra.mxu0 0.0
        %881 = vmatprep.subr.mxu0 0.0
        %882 = vmatpush1.msra.mxu0 0.0
        %883 = vmatprep.subr.mxu0 0.0
        %884 = vmatpush1.msra.mxu0 0.0
        %885 = vmatprep.subr.mxu0 0.0
        %886 = vmatpush1.msra.mxu0 0.0
        %887 = vmatprep.subr.mxu0 0.0
        %888 = vmatpush1.msra.mxu0 0.0
        %889 = vmatprep.subr.mxu0 0.0
        %890 = vmatpush1.msra.mxu0 0.0
        %891 = vmatprep.subr.mxu0 0.0
        %892 = vmatpush1.msra.mxu0 0.0
        %893 = vmatprep.subr.mxu0 0.0
        %894 = vmatpush1.msra.mxu0 0.0
        %895 = vmatprep.subr.mxu0 0.0
        %896 = vmatpush1.msra.mxu0 0.0
        %897 = vmatprep.subr.mxu0 0.0
        %898 = vmatpush1.msra.mxu0 0.0
        %899 = vmatprep.subr.mxu0 0.0
        %900 = vmatpush1.msra.mxu0 0.0
        %901 = vmatprep.subr.mxu0 0.0
        %902 = vmatpush1.msra.mxu0 0.0
        %903 = vmatprep.subr.mxu0 0.0
        %904 = vmatpush1.msra.mxu0 0.0
        %905 = vmatprep.subr.mxu0 0.0
        %906 = vmatpush1.msra.mxu0 0.0
        %907 = vmatprep.subr.mxu0 0.0
        %908 = vmatpush1.msra.mxu0 0.0
        %909 = vmatprep.subr.mxu0 0.0
        %910 = vmatpush1.msra.mxu0 0.0
        %911 = vmatprep.subr.mxu0 0.0
        %912 = vmatpush1.msra.mxu0 0.0
        %913 = vmatprep.subr.mxu0 0.0
        %914 = vmatpush1.msra.mxu0 0.0
        %915 = vmatprep.subr.mxu0 0.0
        %916 = vmatpush1.msra.mxu0 0.0
        %917 = vmatprep.subr.mxu0 0.0
        %918 = vmatpush1.msra.mxu0 0.0
        %919 = vmatprep.subr.mxu0 0.0
        %920 = vmatpush1.msra.mxu0 0.0
        %921 = vmatprep.subr.mxu0 0.0
        %922 = vmatpush1.msra.mxu0 0.0
        %923 = vmatprep.subr.mxu0 0.0
        %924 = vmatpush1.msra.mxu0 0.0
        %925 = vmatprep.subr.mxu0 0.0
        %926 = vmatpush1.msra.mxu0 0.0
        %927 = vmatprep.subr.mxu0 0.0
        %928 = vmatpush1.msra.mxu0 0.0
        %929 = vmatprep.subr.mxu0 0.0
        %930 = vmatpush1.msra.mxu0 0.0
        %931 = vmatprep.subr.mxu0 0.0
        %932 = vmatpush1.msra.mxu0 0.0
        %933 = vmatprep.mubr.f32.mxu0 0.0
        %934 = vmatmul.mubr.f32.gmra.mrb[0].mxu0 %v858
        %v935 = vpop.f32.mrb[0].mxu0
        %v936 = vadd.f32 0.0, %v935
        %v937 = vpop.f32.mrb[0].mxu0
        %938 = vmatprep.mubr.f32.mxu0 0.0
        %939 = vmatmul.mubr.f32.gmra.mrb[0].mxu0 %v861
        %v940 = vpop.f32.mrb[0].mxu0
        %v941 = vadd.f32 0.0, %v940
        %v942 = vpop.f32.mrb[0].mxu0
        %943 = vmatprep.mubr.f32.mxu0 0.0
        %944 = vmatmul.mubr.f32.gmra.mrb[0].mxu0 %v864
        %v945 = vpop.f32.mrb[0].mxu0
        %v946 = vadd.f32 0.0, %v945
        %v947 = vpop.f32.mrb[0].mxu0
        %948 = vmatprep.mubr.f32.mxu0 0.0
        %949 = vmatmul.mubr.f32.gmra.mrb[0].mxu0 %v867
        %v950 = vpop.f32.mrb[0].mxu0
        %v951 = vadd.f32 0.0, %v950
        %v952 = vpop.f32.mrb[0].mxu0
        %953 = vdwg.mxu0
        %v955 = vsel %vm469, %v768, 0
        %v958 = vsel %vm469, %v769, 0
        %v961 = vsel %vm469, %v770, 0
        %v964 = vsel %vm469, %v771, 0
        %966 = vmatprep.subr.mxu0 0.0
        %967 = vmatpush1.msra.mxu0 %v760
        %968 = vmatprep.subr.mxu0 0.0
        %969 = vmatpush1.msra.mxu0 %v765
        %970 = vmatprep.subr.mxu0 0.0
        %971 = vmatpush1.msra.mxu0 0.0
        %972 = vmatprep.subr.mxu0 0.0
        %973 = vmatpush1.msra.mxu0 0.0
        %974 = vmatprep.subr.mxu0 0.0
        %975 = vmatpush1.msra.mxu0 0.0
        %976 = vmatprep.subr.mxu0 0.0
        %977 = vmatpush1.msra.mxu0 0.0
        %978 = vmatprep.subr.mxu0 0.0
        %979 = vmatpush1.msra.mxu0 0.0
        %980 = vmatprep.subr.mxu0 0.0
        %981 = vmatpush1.msra.mxu0 0.0
        %982 = vmatprep.subr.mxu0 0.0
        %983 = vmatpush1.msra.mxu0 0.0
        %984 = vmatprep.subr.mxu0 0.0
        %985 = vmatpush1.msra.mxu0 0.0
        %986 = vmatprep.subr.mxu0 0.0
        %987 = vmatpush1.msra.mxu0 0.0
        %988 = vmatprep.subr.mxu0 0.0
        %989 = vmatpush1.msra.mxu0 0.0
        %990 = vmatprep.subr.mxu0 0.0
        %991 = vmatpush1.msra.mxu0 0.0
        %992 = vmatprep.subr.mxu0 0.0
        %993 = vmatpush1.msra.mxu0 0.0
        %994 = vmatprep.subr.mxu0 0.0
        %995 = vmatpush1.msra.mxu0 0.0
        %996 = vmatprep.subr.mxu0 0.0
        %997 = vmatpush1.msra.mxu0 0.0
        %998 = vmatprep.subr.mxu0 0.0
        %999 = vmatpush1.msra.mxu0 0.0
        %1000 = vmatprep.subr.mxu0 0.0
        %1001 = vmatpush1.msra.mxu0 0.0
        %1002 = vmatprep.subr.mxu0 0.0
        %1003 = vmatpush1.msra.mxu0 0.0
        %1004 = vmatprep.subr.mxu0 0.0
        %1005 = vmatpush1.msra.mxu0 0.0
        %1006 = vmatprep.subr.mxu0 0.0
        %1007 = vmatpush1.msra.mxu0 0.0
        %1008 = vmatprep.subr.mxu0 0.0
        %1009 = vmatpush1.msra.mxu0 0.0
        %1010 = vmatprep.subr.mxu0 0.0
        %1011 = vmatpush1.msra.mxu0 0.0
        %1012 = vmatprep.subr.mxu0 0.0
        %1013 = vmatpush1.msra.mxu0 0.0
        %1014 = vmatprep.subr.mxu0 0.0
        %1015 = vmatpush1.msra.mxu0 0.0
        %1016 = vmatprep.subr.mxu0 0.0
        %1017 = vmatpush1.msra.mxu0 0.0
        %1018 = vmatprep.subr.mxu0 0.0
        %1019 = vmatpush1.msra.mxu0 0.0
        %1020 = vmatprep.subr.mxu0 0.0
        %1021 = vmatpush1.msra.mxu0 0.0
        %1022 = vmatprep.subr.mxu0 0.0
        %1023 = vmatpush1.msra.mxu0 0.0
        %1024 = vmatprep.subr.mxu0 0.0
        %1025 = vmatpush1.msra.mxu0 0.0
        %1026 = vmatprep.subr.mxu0 0.0
        %1027 = vmatpush1.msra.mxu0 0.0
        %1028 = vmatprep.subr.mxu0 0.0
        %1029 = vmatpush1.msra.mxu0 0.0
        %1030 = vmatprep.mubr.f32.mxu0 0.0
        %1031 = vmatmul.mubr.f32.gmra.mrb[0].mxu0 %v955
        %v1032 = vpop.f32.mrb[0].mxu0
        %v1033 = vadd.f32 %v936, %v1032
        %v1034 = vpop.f32.mrb[0].mxu0
        %1035 = vmatprep.mubr.f32.mxu0 0.0
        %1036 = vmatmul.mubr.f32.gmra.mrb[0].mxu0 %v958
        %v1037 = vpop.f32.mrb[0].mxu0
        %v1038 = vadd.f32 %v941, %v1037
        %v1039 = vpop.f32.mrb[0].mxu0
        %1040 = vmatprep.mubr.f32.mxu0 0.0
        %1041 = vmatmul.mubr.f32.gmra.mrb[0].mxu0 %v961
        %v1042 = vpop.f32.mrb[0].mxu0
        %v1043 = vadd.f32 %v946, %v1042
        %v1044 = vpop.f32.mrb[0].mxu0
        %1045 = vmatprep.mubr.f32.mxu0 0.0
        %1046 = vmatmul.mubr.f32.gmra.mrb[0].mxu0 %v964
        %v1047 = vpop.f32.mrb[0].mxu0
        %v1048 = vadd.f32 %v951, %v1047
        %v1049 = vpop.f32.mrb[0].mxu0
        %1050 = vdwg.mxu0
        %v1051 = vld [vmem:[%s5] sm:$0xff]
        %v1052 = vld [vmem:[%s5 + $0x8] sm:$0xff]
        %v1053 = vld [vmem:[%s5 + $0x10] sm:$0xff]
        %v1054 = vld [vmem:[%s5 + $0x18] sm:$0xff]
        %v1055 = vld [vmem:[%s6] sm:$0x1]
        %v1057 = vlaneseq
        %v1058 = vshrl.u32 %v1057, 7
        %v1059 = vsub.s32 0, %v1058
        %v1060 = vrot.slane %v1055, %v1059
        %v1063 = vsel %vm601, %v439, 0
        %v1066 = vsel %vm601, %v440, 0
        %v1069 = vsel %vm601, %v1051, 0
        %v1072 = vsel %vm601, %v1052, 0
        %v1075 = vsel %vm601, %v1053, 0
        %v1078 = vsel %vm601, %v1054, 0
        %1080 = vmatprep.subr.mxu0 0.0
        %1081 = vmatpush1.xpose.msra.mxu0 %v1069
        %1082 = vmatprep.subr.mxu0 0.0
        %1083 = vmatpush1.xpose.msra.mxu0 %v1072
        %1084 = vmatprep.subr.mxu0 0.0
        %1085 = vmatpush1.xpose.msra.mxu0 %v1075
        %1086 = vmatprep.subr.mxu0 0.0
        %1087 = vmatpush1.xpose.msra.mxu0 %v1078
        %1088 = vmatprep.subr.mxu0 0.0
        %1089 = vmatpush1.xpose.msra.mxu0 0.0
        %1090 = vmatprep.subr.mxu0 0.0
        %1091 = vmatpush1.xpose.msra.mxu0 0.0
        %1092 = vmatprep.subr.mxu0 0.0
        %1093 = vmatpush1.xpose.msra.mxu0 0.0
        %1094 = vmatprep.subr.mxu0 0.0
        %1095 = vmatpush1.xpose.msra.mxu0 0.0
        %1096 = vmatprep.subr.mxu0 0.0
        %1097 = vmatpush1.xpose.msra.mxu0 0.0
        %1098 = vmatprep.subr.mxu0 0.0
        %1099 = vmatpush1.xpose.msra.mxu0 0.0
        %1100 = vmatprep.subr.mxu0 0.0
        %1101 = vmatpush1.xpose.msra.mxu0 0.0
        %1102 = vmatprep.subr.mxu0 0.0
        %1103 = vmatpush1.xpose.msra.mxu0 0.0
        %1104 = vmatprep.subr.mxu0 0.0
        %1105 = vmatpush1.xpose.msra.mxu0 0.0
        %1106 = vmatprep.subr.mxu0 0.0
        %1107 = vmatpush1.xpose.msra.mxu0 0.0
        %1108 = vmatprep.subr.mxu0 0.0
        %1109 = vmatpush1.xpose.msra.mxu0 0.0
        %1110 = vmatprep.subr.mxu0 0.0
        %1111 = vmatpush1.xpose.msra.mxu0 0.0
        %1112 = vmatprep.subr.mxu0 0.0
        %1113 = vmatpush1.xpose.msra.mxu0 0.0
        %1114 = vmatprep.subr.mxu0 0.0
        %1115 = vmatpush1.xpose.msra.mxu0 0.0
        %1116 = vmatprep.subr.mxu0 0.0
        %1117 = vmatpush1.xpose.msra.mxu0 0.0
        %1118 = vmatprep.subr.mxu0 0.0
        %1119 = vmatpush1.xpose.msra.mxu0 0.0
        %1120 = vmatprep.subr.mxu0 0.0
        %1121 = vmatpush1.xpose.msra.mxu0 0.0
        %1122 = vmatprep.subr.mxu0 0.0
        %1123 = vmatpush1.xpose.msra.mxu0 0.0
        %1124 = vmatprep.subr.mxu0 0.0
        %1125 = vmatpush1.xpose.msra.mxu0 0.0
        %1126 = vmatprep.subr.mxu0 0.0
        %1127 = vmatpush1.xpose.msra.mxu0 0.0
        %1128 = vmatprep.subr.mxu0 0.0
        %1129 = vmatpush1.xpose.msra.mxu0 0.0
        %1130 = vmatprep.subr.mxu0 0.0
        %1131 = vmatpush1.xpose.msra.mxu0 0.0
        %1132 = vmatprep.subr.mxu0 0.0
        %1133 = vmatpush1.xpose.msra.mxu0 0.0
        %1134 = vmatprep.subr.mxu0 0.0
        %1135 = vmatpush1.xpose.msra.mxu0 0.0
        %1136 = vmatprep.subr.mxu0 0.0
        %1137 = vmatpush1.xpose.msra.mxu0 0.0
        %1138 = vmatprep.subr.mxu0 0.0
        %1139 = vmatpush1.xpose.msra.mxu0 0.0
        %1140 = vmatprep.subr.mxu0 0.0
        %1141 = vmatpush1.xpose.msra.mxu0 0.0
        %1142 = vmatprep.subr.mxu0 0.0
        %1143 = vmatpush1.xpose.msra.mxu0 0.0
        %1144 = vmatprep.mubr.f32.mxu0 0.0
        %1145 = vmatmul.mubr.f32.gmra.mrb[0].mxu0 %v1063
        %v1146 = vpop.f32.mrb[0].mxu0
        %v1147 = vadd.f32 %v1060, %v1146
        %v1148 = vpop.f32.mrb[0].mxu0
        %1149 = vmatprep.mubr.f32.mxu0 0.0
        %1150 = vmatmul.mubr.f32.gmra.mrb[0].mxu0 %v1066
        %v1151 = vpop.f32.mrb[0].mxu0
        %v1152 = vadd.f32 %v1060, %v1151
        %v1153 = vpop.f32.mrb[0].mxu0
        %1154 = vdwg.mxu0
        %v1155 = vmul.f32 %v1147, 0.5
        %v1156 = vmul.f32 %v1152, 0.5
        %v1157 = vmul.f32 %v1147, 0.70710677
        %v1158 = vmul.f32 %v1152, 0.70710677
        %v1159 = verf.f32.pop %v1157
        %v1160 = verf.f32.pop %v1158
        %v1161 = vadd.f32 %v1159, 1.0
        %v1162 = vadd.f32 %v1160, 1.0
        %v1163 = vmul.f32 %v1155, %v1161
        %v1164 = vmul.f32 %v1156, %v1162
        %v1165 = vld [vmem:[%s7] sm:$0xff]
        %v1166 = vld [vmem:[%s7 + $0x8] sm:$0xff]
        %v1167 = vld [vmem:[%s7 + $0x10] sm:$0xff]
        %v1168 = vld [vmem:[%s7 + $0x18] sm:$0xff]
        %v1169 = vld [vmem:[%s8] sm:$0x1]
        %v1171 = vlaneseq
        %v1172 = vshrl.u32 %v1171, 7
        %v1173 = vsub.s32 0, %v1172
        %v1174 = vrot.slane %v1169, %v1173
        %v1177 = vsel %vm601, %v1163, 0
        %v1180 = vsel %vm601, %v1164, 0
        %v1183 = vsel %vm601, %v1165, 0
        %v1186 = vsel %vm601, %v1166, 0
        %v1189 = vsel %vm601, %v1167, 0
        %v1192 = vsel %vm601, %v1168, 0
        %1194 = vmatprep.subr.mxu0 0.0
        %1195 = vmatpush1.xpose.msra.mxu0 %v1183
        %1196 = vmatprep.subr.mxu0 0.0
        %1197 = vmatpush1.xpose.msra.mxu0 %v1186
        %1198 = vmatprep.subr.mxu0 0.0
        %1199 = vmatpush1.xpose.msra.mxu0 %v1189
        %1200 = vmatprep.subr.mxu0 0.0
        %1201 = vmatpush1.xpose.msra.mxu0 %v1192
        %1202 = vmatprep.subr.mxu0 0.0
        %1203 = vmatpush1.xpose.msra.mxu0 0.0
        %1204 = vmatprep.subr.mxu0 0.0
        %1205 = vmatpush1.xpose.msra.mxu0 0.0
        %1206 = vmatprep.subr.mxu0 0.0
        %1207 = vmatpush1.xpose.msra.mxu0 0.0
        %1208 = vmatprep.subr.mxu0 0.0
        %1209 = vmatpush1.xpose.msra.mxu0 0.0
        %1210 = vmatprep.subr.mxu0 0.0
        %1211 = vmatpush1.xpose.msra.mxu0 0.0
        %1212 = vmatprep.subr.mxu0 0.0
        %1213 = vmatpush1.xpose.msra.mxu0 0.0
        %1214 = vmatprep.subr.mxu0 0.0
        %1215 = vmatpush1.xpose.msra.mxu0 0.0
        %1216 = vmatprep.subr.mxu0 0.0
        %1217 = vmatpush1.xpose.msra.mxu0 0.0
        %1218 = vmatprep.subr.mxu0 0.0
        %1219 = vmatpush1.xpose.msra.mxu0 0.0
        %1220 = vmatprep.subr.mxu0 0.0
        %1221 = vmatpush1.xpose.msra.mxu0 0.0
        %1222 = vmatprep.subr.mxu0 0.0
        %1223 = vmatpush1.xpose.msra.mxu0 0.0
        %1224 = vmatprep.subr.mxu0 0.0
        %1225 = vmatpush1.xpose.msra.mxu0 0.0
        %1226 = vmatprep.subr.mxu0 0.0
        %1227 = vmatpush1.xpose.msra.mxu0 0.0
        %1228 = vmatprep.subr.mxu0 0.0
        %1229 = vmatpush1.xpose.msra.mxu0 0.0
        %1230 = vmatprep.subr.mxu0 0.0
        %1231 = vmatpush1.xpose.msra.mxu0 0.0
        %1232 = vmatprep.subr.mxu0 0.0
        %1233 = vmatpush1.xpose.msra.mxu0 0.0
        %1234 = vmatprep.subr.mxu0 0.0
        %1235 = vmatpush1.xpose.msra.mxu0 0.0
        %1236 = vmatprep.subr.mxu0 0.0
        %1237 = vmatpush1.xpose.msra.mxu0 0.0
        %1238 = vmatprep.subr.mxu0 0.0
        %1239 = vmatpush1.xpose.msra.mxu0 0.0
        %1240 = vmatprep.subr.mxu0 0.0
        %1241 = vmatpush1.xpose.msra.mxu0 0.0
        %1242 = vmatprep.subr.mxu0 0.0
        %1243 = vmatpush1.xpose.msra.mxu0 0.0
        %1244 = vmatprep.subr.mxu0 0.0
        %1245 = vmatpush1.xpose.msra.mxu0 0.0
        %1246 = vmatprep.subr.mxu0 0.0
        %1247 = vmatpush1.xpose.msra.mxu0 0.0
        %1248 = vmatprep.subr.mxu0 0.0
        %1249 = vmatpush1.xpose.msra.mxu0 0.0
        %1250 = vmatprep.subr.mxu0 0.0
        %1251 = vmatpush1.xpose.msra.mxu0 0.0
        %1252 = vmatprep.subr.mxu0 0.0
        %1253 = vmatpush1.xpose.msra.mxu0 0.0
        %1254 = vmatprep.subr.mxu0 0.0
        %1255 = vmatpush1.xpose.msra.mxu0 0.0
        %1256 = vmatprep.subr.mxu0 0.0
        %1257 = vmatpush1.xpose.msra.mxu0 0.0
        %1258 = vmatprep.mubr.f32.mxu0 0.0
        %1259 = vmatmul.mubr.f32.gmra.mrb[0].mxu0 %v1177
        %v1260 = vpop.f32.mrb[0].mxu0
        %v1261 = vadd.f32 %v1174, %v1260
        %v1262 = vpop.f32.mrb[0].mxu0
        %1263 = vmatprep.mubr.f32.mxu0 0.0
        %1264 = vmatmul.mubr.f32.gmra.mrb[0].mxu0 %v1180
        %v1265 = vpop.f32.mrb[0].mxu0
        %v1266 = vadd.f32 %v1174, %v1265
        %v1267 = vpop.f32.mrb[0].mxu0
        %1268 = vdwg.mxu0
        %v1270 = vsel %vm469, %v1033, 0
        %v1273 = vsel %vm469, %v1038, 0
        %1275 = vmatprep.subr.mxu0 0.0
        %1276 = vmatpush1.msra.mxu0 %v439
        %1277 = vmatprep.subr.mxu0 0.0
        %1278 = vmatpush1.msra.mxu0 %v440
        %1279 = vmatprep.subr.mxu0 0.0
        %1280 = vmatpush1.msra.mxu0 0.0
        %1281 = vmatprep.subr.mxu0 0.0
        %1282 = vmatpush1.msra.mxu0 0.0
        %1283 = vmatprep.subr.mxu0 0.0
        %1284 = vmatpush1.msra.mxu0 0.0
        %1285 = vmatprep.subr.mxu0 0.0
        %1286 = vmatpush1.msra.mxu0 0.0
        %1287 = vmatprep.subr.mxu0 0.0
        %1288 = vmatpush1.msra.mxu0 0.0
        %1289 = vmatprep.subr.mxu0 0.0
        %1290 = vmatpush1.msra.mxu0 0.0
        %1291 = vmatprep.subr.mxu0 0.0
        %1292 = vmatpush1.msra.mxu0 0.0
        %1293 = vmatprep.subr.mxu0 0.0
        %1294 = vmatpush1.msra.mxu0 0.0
        %1295 = vmatprep.subr.mxu0 0.0
        %1296 = vmatpush1.msra.mxu0 0.0
        %1297 = vmatprep.subr.mxu0 0.0
        %1298 = vmatpush1.msra.mxu0 0.0
        %1299 = vmatprep.subr.mxu0 0.0
        %1300 = vmatpush1.msra.mxu0 0.0
        %1301 = vmatprep.subr.mxu0 0.0
        %1302 = vmatpush1.msra.mxu0 0.0
        %1303 = vmatprep.subr.mxu0 0.0
        %1304 = vmatpush1.msra.mxu0 0.0
        %1305 = vmatprep.subr.mxu0 0.0
        %1306 = vmatpush1.msra.mxu0 0.0
        %1307 = vmatprep.subr.mxu0 0.0
        %1308 = vmatpush1.msra.mxu0 0.0
        %1309 = vmatprep.subr.mxu0 0.0
        %1310 = vmatpush1.msra.mxu0 0.0
        %1311 = vmatprep.subr.mxu0 0.0
        %1312 = vmatpush1.msra.mxu0 0.0
        %1313 = vmatprep.subr.mxu0 0.0
        %1314 = vmatpush1.msra.mxu0 0.0
        %1315 = vmatprep.subr.mxu0 0.0
        %1316 = vmatpush1.msra.mxu0 0.0
        %1317 = vmatprep.subr.mxu0 0.0
        %1318 = vmatpush1.msra.mxu0 0.0
        %1319 = vmatprep.subr.mxu0 0.0
        %1320 = vmatpush1.msra.mxu0 0.0
        %1321 = vmatprep.subr.mxu0 0.0
        %1322 = vmatpush1.msra.mxu0 0.0
        %1323 = vmatprep.subr.mxu0 0.0
        %1324 = vmatpush1.msra.mxu0 0.0
        %1325 = vmatprep.subr.mxu0 0.0
        %1326 = vmatpush1.msra.mxu0 0.0
        %1327 = vmatprep.subr.mxu0 0.0
        %1328 = vmatpush1.msra.mxu0 0.0
        %1329 = vmatprep.subr.mxu0 0.0
        %1330 = vmatpush1.msra.mxu0 0.0
        %1331 = vmatprep.subr.mxu0 0.0
        %1332 = vmatpush1.msra.mxu0 0.0
        %1333 = vmatprep.subr.mxu0 0.0
        %1334 = vmatpush1.msra.mxu0 0.0
        %1335 = vmatprep.subr.mxu0 0.0
        %1336 = vmatpush1.msra.mxu0 0.0
        %1337 = vmatprep.subr.mxu0 0.0
        %1338 = vmatpush1.msra.mxu0 0.0
        %1339 = vmatprep.mubr.f32.mxu0 0.0
        %1340 = vmatmul.mubr.f32.gmra.mrb[0].mxu0 %v1270
        %v1341 = vpop.f32.mrb[0].mxu0
        %v1342 = vadd.f32 0.0, %v1341
        %v1343 = vpop.f32.mrb[0].mxu0
        %1344 = vmatprep.mubr.f32.mxu0 0.0
        %1345 = vmatmul.mubr.f32.gmra.mrb[0].mxu0 %v1273
        %v1346 = vpop.f32.mrb[0].mxu0
        %v1347 = vadd.f32 0.0, %v1346
        %v1348 = vpop.f32.mrb[0].mxu0
        %1349 = vdwg.mxu0
        %v1350 = vmul.f32 %v1342, 0.5
        %v1351 = vmul.f32 %v1347, 0.5
        %v1352 = vmul.f32 %v1342, 0.70710677
        %v1353 = vmul.f32 %v1347, 0.70710677
        %v1354 = verf.f32.pop %v1352
        %v1355 = verf.f32.pop %v1353
        %v1356 = vadd.f32 %v1354, 1.0
        %v1357 = vadd.f32 %v1355, 1.0
        %v1358 = vmul.f32 %v1350, %v1356
        %v1359 = vmul.f32 %v1351, %v1357
        %v1361 = vsel %vm469, %v1261, 0
        %v1364 = vsel %vm469, %v1266, 0
        %1366 = vmatprep.subr.mxu0 0.0
        %1367 = vmatpush1.msra.mxu0 %v1358
        %1368 = vmatprep.subr.mxu0 0.0
        %1369 = vmatpush1.msra.mxu0 %v1359
        %1370 = vmatprep.subr.mxu0 0.0
        %1371 = vmatpush1.msra.mxu0 0.0
        %1372 = vmatprep.subr.mxu0 0.0
        %1373 = vmatpush1.msra.mxu0 0.0
        %1374 = vmatprep.subr.mxu0 0.0
        %1375 = vmatpush1.msra.mxu0 0.0
        %1376 = vmatprep.subr.mxu0 0.0
        %1377 = vmatpush1.msra.mxu0 0.0
        %1378 = vmatprep.subr.mxu0 0.0
        %1379 = vmatpush1.msra.mxu0 0.0
        %1380 = vmatprep.subr.mxu0 0.0
        %1381 = vmatpush1.msra.mxu0 0.0
        %1382 = vmatprep.subr.mxu0 0.0
        %1383 = vmatpush1.msra.mxu0 0.0
        %1384 = vmatprep.subr.mxu0 0.0
        %1385 = vmatpush1.msra.mxu0 0.0
        %1386 = vmatprep.subr.mxu0 0.0
        %1387 = vmatpush1.msra.mxu0 0.0
        %1388 = vmatprep.subr.mxu0 0.0
        %1389 = vmatpush1.msra.mxu0 0.0
        %1390 = vmatprep.subr.mxu0 0.0
        %1391 = vmatpush1.msra.mxu0 0.0
        %1392 = vmatprep.subr.mxu0 0.0
        %1393 = vmatpush1.msra.mxu0 0.0
        %1394 = vmatprep.subr.mxu0 0.0
        %1395 = vmatpush1.msra.mxu0 0.0
        %1396 = vmatprep.subr.mxu0 0.0
        %1397 = vmatpush1.msra.mxu0 0.0
        %1398 = vmatprep.subr.mxu0 0.0
        %1399 = vmatpush1.msra.mxu0 0.0
        %1400 = vmatprep.subr.mxu0 0.0
        %1401 = vmatpush1.msra.mxu0 0.0
        %1402 = vmatprep.subr.mxu0 0.0
        %1403 = vmatpush1.msra.mxu0 0.0
        %1404 = vmatprep.subr.mxu0 0.0
        %1405 = vmatpush1.msra.mxu0 0.0
        %1406 = vmatprep.subr.mxu0 0.0
        %1407 = vmatpush1.msra.mxu0 0.0
        %1408 = vmatprep.subr.mxu0 0.0
        %1409 = vmatpush1.msra.mxu0 0.0
        %1410 = vmatprep.subr.mxu0 0.0
        %1411 = vmatpush1.msra.mxu0 0.0
        %1412 = vmatprep.subr.mxu0 0.0
        %1413 = vmatpush1.msra.mxu0 0.0
        %1414 = vmatprep.subr.mxu0 0.0
        %1415 = vmatpush1.msra.mxu0 0.0
        %1416 = vmatprep.subr.mxu0 0.0
        %1417 = vmatpush1.msra.mxu0 0.0
        %1418 = vmatprep.subr.mxu0 0.0
        %1419 = vmatpush1.msra.mxu0 0.0
        %1420 = vmatprep.subr.mxu0 0.0
        %1421 = vmatpush1.msra.mxu0 0.0
        %1422 = vmatprep.subr.mxu0 0.0
        %1423 = vmatpush1.msra.mxu0 0.0
        %1424 = vmatprep.subr.mxu0 0.0
        %1425 = vmatpush1.msra.mxu0 0.0
        %1426 = vmatprep.subr.mxu0 0.0
        %1427 = vmatpush1.msra.mxu0 0.0
        %1428 = vmatprep.subr.mxu0 0.0
        %1429 = vmatpush1.msra.mxu0 0.0
        %1430 = vmatprep.mubr.f32.mxu0 0.0
        %1431 = vmatmul.mubr.f32.gmra.mrb[0].mxu0 %v1361
        %v1432 = vpop.f32.mrb[0].mxu0
        %v1433 = vadd.f32 0.0, %v1432
        %v1434 = vpop.f32.mrb[0].mxu0
        %1435 = vmatprep.mubr.f32.mxu0 0.0
        %1436 = vmatmul.mubr.f32.gmra.mrb[0].mxu0 %v1364
        %v1437 = vpop.f32.mrb[0].mxu0
        %v1438 = vadd.f32 0.0, %v1437
        %v1439 = vpop.f32.mrb[0].mxu0
        %1440 = vdwg.mxu0
        %1441 = vrot.lane.b32.xlu0 %v439, 112
        %v1442 = vpop.permute.xlu0 %1441
        %1443 = vrot.lane.b32.xlu0 %v440, 112
        %v1444 = vpop.permute.xlu0 %1443
        %v1448 = vsel %vm469, %v1043, 0
        %v1451 = vsel %vm469, %v1048, 0
        %1453 = vmatprep.subr.mxu0 0.0
        %1454 = vmatpush1.msra.mxu0 %v1442
        %1455 = vmatprep.subr.mxu0 0.0
        %1456 = vmatpush1.msra.mxu0 %v1444
        %1457 = vmatprep.subr.mxu0 0.0
        %1458 = vmatpush1.msra.mxu0 0.0
        %1459 = vmatprep.subr.mxu0 0.0
        %1460 = vmatpush1.msra.mxu0 0.0
        %1461 = vmatprep.subr.mxu0 0.0
        %1462 = vmatpush1.msra.mxu0 0.0
        %1463 = vmatprep.subr.mxu0 0.0
        %1464 = vmatpush1.msra.mxu0 0.0
        %1465 = vmatprep.subr.mxu0 0.0
        %1466 = vmatpush1.msra.mxu0 0.0
        %1467 = vmatprep.subr.mxu0 0.0
        %1468 = vmatpush1.msra.mxu0 0.0
        %1469 = vmatprep.subr.mxu0 0.0
        %1470 = vmatpush1.msra.mxu0 0.0
        %1471 = vmatprep.subr.mxu0 0.0
        %1472 = vmatpush1.msra.mxu0 0.0
        %1473 = vmatprep.subr.mxu0 0.0
        %1474 = vmatpush1.msra.mxu0 0.0
        %1475 = vmatprep.subr.mxu0 0.0
        %1476 = vmatpush1.msra.mxu0 0.0
        %1477 = vmatprep.subr.mxu0 0.0
        %1478 = vmatpush1.msra.mxu0 0.0
        %1479 = vmatprep.subr.mxu0 0.0
        %1480 = vmatpush1.msra.mxu0 0.0
        %1481 = vmatprep.subr.mxu0 0.0
        %1482 = vmatpush1.msra.mxu0 0.0
        %1483 = vmatprep.subr.mxu0 0.0
        %1484 = vmatpush1.msra.mxu0 0.0
        %1485 = vmatprep.subr.mxu0 0.0
        %1486 = vmatpush1.msra.mxu0 0.0
        %1487 = vmatprep.subr.mxu0 0.0
        %1488 = vmatpush1.msra.mxu0 0.0
        %1489 = vmatprep.subr.mxu0 0.0
        %1490 = vmatpush1.msra.mxu0 0.0
        %1491 = vmatprep.subr.mxu0 0.0
        %1492 = vmatpush1.msra.mxu0 0.0
        %1493 = vmatprep.subr.mxu0 0.0
        %1494 = vmatpush1.msra.mxu0 0.0
        %1495 = vmatprep.subr.mxu0 0.0
        %1496 = vmatpush1.msra.mxu0 0.0
        %1497 = vmatprep.subr.mxu0 0.0
        %1498 = vmatpush1.msra.mxu0 0.0
        %1499 = vmatprep.subr.mxu0 0.0
        %1500 = vmatpush1.msra.mxu0 0.0
        %1501 = vmatprep.subr.mxu0 0.0
        %1502 = vmatpush1.msra.mxu0 0.0
        %1503 = vmatprep.subr.mxu0 0.0
        %1504 = vmatpush1.msra.mxu0 0.0
        %1505 = vmatprep.subr.mxu0 0.0
        %1506 = vmatpush1.msra.mxu0 0.0
        %1507 = vmatprep.subr.mxu0 0.0
        %1508 = vmatpush1.msra.mxu0 0.0
        %1509 = vmatprep.subr.mxu0 0.0
        %1510 = vmatpush1.msra.mxu0 0.0
        %1511 = vmatprep.subr.mxu0 0.0
        %1512 = vmatpush1.msra.mxu0 0.0
        %1513 = vmatprep.subr.mxu0 0.0
        %1514 = vmatpush1.msra.mxu0 0.0
        %1515 = vmatprep.subr.mxu0 0.0
        %1516 = vmatpush1.msra.mxu0 0.0
        %1517 = vmatprep.mubr.f32.mxu0 0.0
        %1518 = vmatmul.mubr.f32.gmra.mrb[0].mxu0 %v1448
        %v1519 = vpop.f32.mrb[0].mxu0
        %v1520 = vadd.f32 0.0, %v1519
        %v1521 = vpop.f32.mrb[0].mxu0
        %1522 = vmatprep.mubr.f32.mxu0 0.0
        %1523 = vmatmul.mubr.f32.gmra.mrb[0].mxu0 %v1451
        %v1524 = vpop.f32.mrb[0].mxu0
        %v1525 = vadd.f32 0.0, %v1524
        %v1526 = vpop.f32.mrb[0].mxu0
        %1527 = vdwg.mxu0
        %v1528 = vmul.f32 %v1520, 0.5
        %v1529 = vmul.f32 %v1525, 0.5
        %v1530 = vmul.f32 %v1520, 0.70710677
        %v1531 = vmul.f32 %v1525, 0.70710677
        %v1532 = verf.f32.pop %v1530
        %v1533 = verf.f32.pop %v1531
        %v1534 = vadd.f32 %v1532, 1.0
        %v1535 = vadd.f32 %v1533, 1.0
        %v1536 = vmul.f32 %v1528, %v1534
        %v1537 = vmul.f32 %v1529, %v1535
        %1538 = vrot.lane.b32.xlu0 %v1261, 112
        %v1539 = vpop.permute.xlu0 %1538
        %1540 = vrot.lane.b32.xlu0 %v1266, 112
        %v1541 = vpop.permute.xlu0 %1540
        %v1542 = vsel %vm469, %v1539, 0
        %v1544 = vsel %vm469, %v1541, 0
        %1546 = vmatprep.subr.mxu0 0.0
        %1547 = vmatpush1.msra.mxu0 %v1536
        %1548 = vmatprep.subr.mxu0 0.0
        %1549 = vmatpush1.msra.mxu0 %v1537
        %1550 = vmatprep.subr.mxu0 0.0
        %1551 = vmatpush1.msra.mxu0 0.0
        %1552 = vmatprep.subr.mxu0 0.0
        %1553 = vmatpush1.msra.mxu0 0.0
        %1554 = vmatprep.subr.mxu0 0.0
        %1555 = vmatpush1.msra.mxu0 0.0
        %1556 = vmatprep.subr.mxu0 0.0
        %1557 = vmatpush1.msra.mxu0 0.0
        %1558 = vmatprep.subr.mxu0 0.0
        %1559 = vmatpush1.msra.mxu0 0.0
        %1560 = vmatprep.subr.mxu0 0.0
        %1561 = vmatpush1.msra.mxu0 0.0
        %1562 = vmatprep.subr.mxu0 0.0
        %1563 = vmatpush1.msra.mxu0 0.0
        %1564 = vmatprep.subr.mxu0 0.0
        %1565 = vmatpush1.msra.mxu0 0.0
        %1566 = vmatprep.subr.mxu0 0.0
        %1567 = vmatpush1.msra.mxu0 0.0
        %1568 = vmatprep.subr.mxu0 0.0
        %1569 = vmatpush1.msra.mxu0 0.0
        %1570 = vmatprep.subr.mxu0 0.0
        %1571 = vmatpush1.msra.mxu0 0.0
        %1572 = vmatprep.subr.mxu0 0.0
        %1573 = vmatpush1.msra.mxu0 0.0
        %1574 = vmatprep.subr.mxu0 0.0
        %1575 = vmatpush1.msra.mxu0 0.0
        %1576 = vmatprep.subr.mxu0 0.0
        %1577 = vmatpush1.msra.mxu0 0.0
        %1578 = vmatprep.subr.mxu0 0.0
        %1579 = vmatpush1.msra.mxu0 0.0
        %1580 = vmatprep.subr.mxu0 0.0
        %1581 = vmatpush1.msra.mxu0 0.0
        %1582 = vmatprep.subr.mxu0 0.0
        %1583 = vmatpush1.msra.mxu0 0.0
        %1584 = vmatprep.subr.mxu0 0.0
        %1585 = vmatpush1.msra.mxu0 0.0
        %1586 = vmatprep.subr.mxu0 0.0
        %1587 = vmatpush1.msra.mxu0 0.0
        %1588 = vmatprep.subr.mxu0 0.0
        %1589 = vmatpush1.msra.mxu0 0.0
        %1590 = vmatprep.subr.mxu0 0.0
        %1591 = vmatpush1.msra.mxu0 0.0
        %1592 = vmatprep.subr.mxu0 0.0
        %1593 = vmatpush1.msra.mxu0 0.0
        %1594 = vmatprep.subr.mxu0 0.0
        %1595 = vmatpush1.msra.mxu0 0.0
        %1596 = vmatprep.subr.mxu0 0.0
        %1597 = vmatpush1.msra.mxu0 0.0
        %1598 = vmatprep.subr.mxu0 0.0
        %1599 = vmatpush1.msra.mxu0 0.0
        %1600 = vmatprep.subr.mxu0 0.0
        %1601 = vmatpush1.msra.mxu0 0.0
        %1602 = vmatprep.subr.mxu0 0.0
        %1603 = vmatpush1.msra.mxu0 0.0
        %1604 = vmatprep.subr.mxu0 0.0
        %1605 = vmatpush1.msra.mxu0 0.0
        %1606 = vmatprep.subr.mxu0 0.0
        %1607 = vmatpush1.msra.mxu0 0.0
        %1608 = vmatprep.subr.mxu0 0.0
        %1609 = vmatpush1.msra.mxu0 0.0
        %1610 = vmatprep.mubr.f32.mxu0 0.0
        %1611 = vmatmul.mubr.f32.gmra.mrb[0].mxu0 %v1542
        %v1612 = vpop.f32.mrb[0].mxu0
        %v1613 = vadd.f32 0.0, %v1612
        %v1614 = vpop.f32.mrb[0].mxu0
        %1615 = vmatprep.mubr.f32.mxu0 0.0
        %1616 = vmatmul.mubr.f32.gmra.mrb[0].mxu0 %v1544
        %v1617 = vpop.f32.mrb[0].mxu0
        %v1618 = vadd.f32 0.0, %v1617
        %v1619 = vpop.f32.mrb[0].mxu0
        %1620 = vdwg.mxu0
        %1623 = vrot.lane.b32.xlu0 %v1613, 16
        %v1624 = vpop.permute.xlu0 %1623
        %1625 = vrot.lane.b32.xlu0 %v1618, 16
        %v1626 = vpop.permute.xlu0 %1625
        %v1629 = vsel %vm469, %v1433, %v1624
        %v1630 = vsel %vm469, %v1438, %v1626
        %v1631 = vsel %vm601, %v1629, 0.0
        %1632 = vadd.xlane.f32.xlu0 %v1631
        %v1633 = vpop.xlane.xlu0 %1632
        %v1634 = vsel %vm601, %v1630, 0.0
        %1635 = vadd.xlane.f32.xlu0 %v1634
        %v1636 = vpop.xlane.xlu0 %1635
        %v1637 = vmul.f32 %v1633, 0.03125
        %v1638 = vmul.f32 %v1636, 0.03125
        %v1639 = vmul.f32 %v1629, %v1629
        %v1640 = vmul.f32 %v1630, %v1630
        %v1641 = vsel %vm601, %v1639, 0.0
        %1642 = vadd.xlane.f32.xlu0 %v1641
        %v1643 = vpop.xlane.xlu0 %1642
        %v1644 = vsel %vm601, %v1640, 0.0
        %1645 = vadd.xlane.f32.xlu0 %v1644
        %v1646 = vpop.xlane.xlu0 %1645
        %v1647 = vmul.f32 %v1643, 0.03125
        %v1648 = vmul.f32 %v1646, 0.03125
        %v1649 = vmul.f32 %v1637, %v1637
        %v1650 = vmul.f32 %v1638, %v1638
        %v1651 = vsub.f32 %v1647, %v1649
        %v1652 = vsub.f32 %v1648, %v1650
        %v1653 = vadd.f32 %v1651, 1e-05
        %v1654 = vadd.f32 %v1652, 1e-05
        %v1655 = vrsqrt.pop %v1653
        %v1656 = vrsqrt.pop %v1654
        %v1657 = vsub.f32 %v1629, %v1637
        %v1658 = vsub.f32 %v1630, %v1638
        %v1659 = vmul.f32 %v1657, %v1655
        %v1660 = vmul.f32 %v1658, %v1656
        %v1661 = vld [vmem:[%s11] sm:$0x1]
        %v1663 = vlaneseq
        %v1664 = vshrl.u32 %v1663, 7
        %v1665 = vsub.s32 0, %v1664
        %v1666 = vrot.slane %v1661, %v1665
        %v1668 = vmul.f32 %v1659, %v1666
        %v1669 = vmul.f32 %v1660, %v1666
        %v1670 = vld [vmem:[%s12] sm:$0x1]
        %v1672 = vlaneseq
        %v1673 = vshrl.u32 %v1672, 7
        %v1674 = vsub.s32 0, %v1673
        %v1675 = vrot.slane %v1670, %v1674
        %v1677 = vadd.f32 %v1668, %v1675
        %v1678 = vadd.f32 %v1669, %v1675
        %1679 = vst.msk [vmem:[%s433] sm:$0xff] %vm601, %v1677
        %1680 = vst.msk [vmem:[%s433 + $0x8] sm:$0xff] %vm601, %v1678
        %s1681 = sand.u32 %s313, 1
        %s1682 = scalar_lea.sflag [#allocation3], %s1681
        %s1683 = sand.u32 %s313, 1
        %s1684 = smul.addr %s1683, 16
        %s1685 = scalar_lea.vmem [#allocation2], %s1684
        // Predicated region
        $region73: #{hyper_mixer_forward.1} parent=71 // pred_check
          %p1686 = pneg %p323
        $region74: #{hyper_mixer_forward.1} parent=71 // pred_check_branch
          %1688 = sbr.rel (%p1686) target = $region76
        $region75: #{hyper_mixer_forward.1} parent=71 // pred_region
          %s1690 = ssub.s32 256, 256
          %1691 = vsyncadd %s1682, %s1690
          %s1692 = smul.addr %s27, 2
          %s1693 = smul.addr %s1692, 128
          %s1694 = scalar_lea.hbm %s13, %s1693
          %s1695 = sshll.u32 %s1685, 4
          %s1696 = int_to_ptr.vmem [resolvable:$true] %s1695
          %1701 = dma.vmem_to_hbm [thread:$0]  %s1696, 256, %s1694, %s1682, 128, 128, 8
        $region76: #{hyper_mixer_forward.1} parent=71 // pred_fallthru
          _
      $region72: #{hyper_mixer_forward.1} parent=5 // pred_fallthru
        _
      %p1702 = scmp.le.s32.totalorder 2, %s22
      // Predicated region
      $region77: #{hyper_mixer_forward.1} parent=5 // pred_check
        %p1703 = pneg %p1702
      $region78: #{hyper_mixer_forward.1} parent=5 // pred_check_branch
        %1705 = sbr.rel (%p1703) target = $region80
      $region79: #{hyper_mixer_forward.1} parent=5 // pred_region
        %s1706 = ssub.s32 %s22, 2
        // Predicated region
        $region81: #{hyper_mixer_forward.1} parent=79 // pred_check
          %p1707 = pneg %p329
        $region82: #{hyper_mixer_forward.1} parent=79 // pred_check_branch
          %1709 = sbr.rel (%p1707) target = $region84
        $region83: #{hyper_mixer_forward.1} parent=79 // pred_region
          %s1710 = sand.u32 %s314, 1
          %s1711 = scalar_lea.sflag [#allocation3], %s1710
          %s1712 = sand.u32 %s314, 1
          %s1713 = smul.addr %s1712, 16
          %s1714 = scalar_lea.vmem [#allocation2], %s1713
          %1715 = dma.done %s1711, 256
        $region84: #{hyper_mixer_forward.1} parent=79 // pred_fallthru
          _
      $region80: #{hyper_mixer_forward.1} parent=5 // pred_fallthru
        _
    $region6: #{hyper_mixer_forward.1} parent=1 // loop_footer
      %s26 = sadd.s32 1, %s22
    $region7: #{hyper_mixer_forward.1} parent=1 // loop_footer_branch
      %21 = sbr.rel target = $region3
    $region8: #{hyper_mixer_forward.1} parent=1 // loop_exit
      _
    %1716 = vsyncpa [#allocation3], 1
    %s1717 = scalar_lea.sflag [#allocation3], 1
    %1718 = vsyncpa %s1717, 1

</llo_original>
